<compile_context>
chip_gen: v5e
topology: v5e:2x2
jax: 0.10.0
libtpu: 0.0.40
codegen_flags: <defaults>
</compile_context>

<pallas_src>
import jax
import jax.numpy as jnp
from jax.experimental import pallas as pl
from jax.experimental.pallas import tpu as pltpu

KH = KW = 3
PAD = 1


def _dwconv_kernel(x_ref, xh_ref, dw_w_ref, dw_b_ref, pw_w_ref, pw_b_ref,
                   out_ref, act_ref):
    """Fused depthwise 3x3 + BN + ReLU -> pointwise 1x1 + BN + ReLU.

    x_ref   : (1, TH, Wp, Cin)  body rows of the padded input window
    xh_ref  : (1, 2,  Wp, Cin)  bottom 2 halo rows of the window
    dw_w_ref: (KH*KW, Cin)      depthwise weights (BN scale folded in)
    dw_b_ref: (1, Cin)          folded depthwise BN bias
    pw_w_ref: (Cin, TN)         pointwise weights (BN scale folded, bf16)
    pw_b_ref: (1, TN)           folded pointwise BN bias
    out_ref : (1, TH, W, TN)
    act_ref : VMEM (TH*W, Cin) bf16 scratch: depthwise activation cache
    """
    co = pl.program_id(2)
    _, th, w_out, tn = out_ref.shape
    cin = x_ref.shape[-1]

    # NOTE(correctness): the act cache is only valid because the Cout axis is
    # the innermost, sequentially-iterated ("arbitrary") grid axis: one core
    # runs co = 0..nc-1 back-to-back per (n, h) tile, so the depthwise result
    # written at co == 0 is still live for co > 0.  Do not reorder grid axes
    # or mark the Cout axis "parallel".
    @pl.when(co == 0)
    def _depthwise():
        # Stitch body + bottom halo into the (TH+2)-row window.  Both blocks
        # were prefetched by the Pallas pipeline during the previous tile, so
        # the HBM fetch is overlapped instead of exposed.
        xwin = jnp.concatenate([x_ref[0], xh_ref[0]], axis=0)  # (TH+2, Wp, Cin)
        wts = dw_w_ref[...]                                    # (9, Cin)

        # 9-tap depthwise MAC in f32 (inputs are f32).
        # TODO(synk): on v6e/v7x the taps could run in bf16 and the kw offsets
        # could be realised with pltpu.roll on the XLU to unload the VALU;
        # kept f32 + static slices so numerics are chip-independent.
        acc = jnp.zeros((th, w_out, cin), jnp.float32)
        for kh in range(KH):
            for kw in range(KW):
                tap = xwin[kh:kh + th, kw:kw + w_out, :]       # static slices
                acc = acc + tap * wts[kh * KW + kw][None, None, :]

        act = jnp.maximum(acc + dw_b_ref[0][None, None, :], 0.0)
        act_ref[...] = act.reshape(th * w_out, cin).astype(jnp.bfloat16)

    # Pointwise 1x1: (TH*W, Cin) @ (Cin, TN) bf16 matmul on the MXU.
    out = jnp.dot(act_ref[...], pw_w_ref[...],
                  preferred_element_type=jnp.float32)
    out = jnp.maximum(out + pw_b_ref[0][None, :], 0.0)
    out_ref[0] = out.reshape(th, w_out, tn).astype(out_ref.dtype)


def _vmem_capacity_bytes():
    try:
        return int(pltpu.get_tpu_info().vmem_capacity_bytes)
    except Exception:
        kind = jax.devices()[0].device_kind.lower()
        return (64 << 20) if "v7" in kind else (128 << 20)


def _is_v5e():
    kind = jax.devices()[0].device_kind.lower()
    return ("v5e" in kind) or ("v5 lite" in kind) or ("v5lite" in kind)


@jax.jit
def dwconv_forward(x_nchw, dw_w, dw_scale, dw_bias, pw_w, pw_scale, pw_bias):
    """x_nchw: (N, Cin, H, W) f32 -> (N, Cout, H, W) f32 (inference-mode BN)."""
    N, Cin, H, W = x_nchw.shape
    Cout = pw_w.shape[1]
    Wp = W + 2 * PAD

    # ---- fold BN scales into the conv weights (host side, negligible) ----
    dw_wf = (dw_w * dw_scale[None, None, :]).reshape(KH * KW, Cin)
    dw_b = dw_bias.reshape(1, Cin)

    # ---- pad Cout to a lane-dense multiple of 128 (unmasked stores) ----
    Cout_p = ((Cout + 127) // 128) * 128
    pw_wf = jnp.zeros((Cin, Cout_p), jnp.bfloat16)
    pw_wf = pw_wf.at[:, :Cout].set(
        (pw_w * pw_scale[None, :]).astype(jnp.bfloat16))
    pw_b = jnp.zeros((1, Cout_p), jnp.float32).at[:, :Cout].set(
        pw_bias[None, :])

    # ---- Cout tile (per-generation) ----
    if _is_v5e():
        TN = min(Cout_p, 128)      # v5e MXU is 4x(128x128): keep N tiles 128
    elif Cout_p <= 512:
        TN = Cout_p                # collapse the Cout grid axis entirely
    elif Cout_p % 256 == 0:
        TN = 256
    else:
        TN = 128

    # ---- H tile from explicit VMEM accounting against device capacity ----
    cap = _vmem_capacity_bytes()
    vmem_limit = min((cap * 3) // 4, 112 << 20)   # 48 MiB on v7x, 96 MiB else
    budget = int(vmem_limit * 0.85)

    def footprint(th):
        x_body = 2 * th * Wp * Cin * 4            # double-buffered body block
        x_halo = 2 * 2 * Wp * Cin * 4             # double-buffered halo block
        pw = 2 * (Cin * TN * 2 + TN * 4) + 2 * (KH * KW + 1) * Cin * 4
        outb = 2 * th * W * TN * 4                # double-buffered output block
        act = th * W * Cin * 2                    # bf16 act cache (scratch)
        temps = ((th + 2) * Wp * Cin * 4          # stitched window value
                 + th * W * Cin * 4               # f32 depthwise accumulator
                 + th * W * TN * 4)               # f32 matmul result pre-cast
        return x_body + x_halo + pw + outb + act + temps

    max_th = H + (H % 2)                          # even, >= H
    TH = 2
    for cand in range(2, max_th + 1, 2):          # TH must be even (halo spec)
        if footprint(cand) <= budget:
            TH = cand
        else:
            break

    # v7x megacore: make sure the parallel extent N * nh covers both cores.
    if N * (-(-H // TH)) < 2 and TH >= 4:
        half = TH // 2
        TH = half + (half % 2)

    vmem_limit = int(max(vmem_limit, min(cap, footprint(TH) + (8 << 20))))

    nh = -(-H // TH)
    Hp = nh * TH

    # ---- layout + halo pad ------------------------------------------------
    # NCHW -> NHWC plus the conv halo / H-tile padding, all in one XLA copy
    # fusion.  The transpose itself is forced by the PyTorch NCHW interface;
    # the pad rides along in the same pass so it adds no extra HBM traffic.
    # TODO(synk): keep the surrounding model NHWC end-to-end so this layout
    # pass (and the inverse one on the output) disappears entirely -- for a
    # bandwidth-bound op that is the single largest remaining win.
    x = jnp.transpose(x_nchw, (0, 2, 3, 1))
    xpad = jnp.pad(x, ((0, 0), (PAD, Hp - H + PAD), (PAD, PAD), (0, 0)))

    grid = (N, nh, Cout_p // TN)

    out_nhwc = pl.pallas_call(
        _dwconv_kernel,
        out_shape=jax.ShapeDtypeStruct((N, Hp, W, Cout_p), jnp.float32),
        grid_spec=pltpu.PrefetchScalarGridSpec(
            num_scalar_prefetch=0,
            grid=grid,
            in_specs=[
                # body rows [h*TH, h*TH+TH) of the padded input
                pl.BlockSpec((1, TH, Wp, Cin), lambda n, h, c: (n, h, 0, 0)),
                # bottom halo rows [(h+1)*TH, (h+1)*TH+2)   (TH is even)
                pl.BlockSpec((1, 2, Wp, Cin),
                             lambda n, h, c: (n, (h + 1) * (TH // 2), 0, 0)),
                pl.BlockSpec((KH * KW, Cin), lambda n, h, c: (0, 0)),  # dw_w
                pl.BlockSpec((1, Cin), lambda n, h, c: (0, 0)),        # dw_b
                pl.BlockSpec((Cin, TN), lambda n, h, c: (0, c)),       # pw_w
                pl.BlockSpec((1, TN), lambda n, h, c: (0, c)),         # pw_b
            ],
            out_specs=pl.BlockSpec((1, TH, W, TN),
                                   lambda n, h, c: (n, h, 0, c)),
            scratch_shapes=[
                pltpu.VMEM((TH * W, Cin), jnp.bfloat16),   # act cache
            ],
        ),
        compiler_params=pltpu.CompilerParams(
            # N and H-tiles shard across TensorCores (v7x megacore); the Cout
            # axis must stay sequential so the act cache is reused in order.
            dimension_semantics=("parallel", "parallel", "arbitrary"),
            vmem_limit_bytes=vmem_limit,
        ),
    )(xpad, xpad, dw_wf, dw_b, pw_wf, pw_b)

    # Drop the H / Cout padding and go back to NCHW (fuses with the slice).
    return jnp.transpose(out_nhwc[:, :H, :, :Cout], (0, 3, 1, 2))


def _fold_bn(gamma, beta, mean, var, eps=1e-5):
    scale = gamma / jnp.sqrt(var + eps)
    bias = beta - mean * scale
    return scale, bias


def _reference(x_nchw, dw_w, dw_scale, dw_bias, pw_w, pw_scale, pw_bias):
    """Pure-JAX reference emulating the kernel's bf16 pointwise matmul path."""
    N, Cin, H, W = x_nchw.shape
    x = jnp.transpose(x_nchw, (0, 2, 3, 1))
    xpad = jnp.pad(x, ((0, 0), (PAD, PAD), (PAD, PAD), (0, 0)))
    dw_wf = dw_w * dw_scale[None, None, :]
    acc = jnp.zeros((N, H, W, Cin), jnp.float32)
    for kh in range(KH):
        for kw in range(KW):
            acc = acc + xpad[:, kh:kh + H, kw:kw + W, :] * dw_wf[kh, kw, :]
    act = jnp.maximum(acc + dw_bias, 0.0).astype(jnp.bfloat16)
    pw_wf = (pw_w * pw_scale[None, :]).astype(jnp.bfloat16)
    out = jnp.einsum("nhwc,cd->nhwd", act, pw_wf,
                     preferred_element_type=jnp.float32)
    out = jnp.maximum(out + pw_bias, 0.0)
    return jnp.transpose(out, (0, 3, 1, 2))


if __name__ == "__main__":
    key = jax.random.PRNGKey(0)
    N, Cin, Cout, H, W = 2, 4, 8, 16, 16

    k = jax.random.split(key, 10)
    x = jax.random.normal(k[0], (N, Cin, H, W), jnp.float32)

    # Depthwise conv weight: torch (Cin, 1, KH, KW) -> kernel layout (KH, KW, Cin)
    dw_w = jax.random.normal(k[1], (KH, KW, Cin), jnp.float32) * 0.3
    # Pointwise conv weight: torch (Cout, Cin, 1, 1) -> kernel layout (Cin, Cout)
    pw_w = jax.random.normal(k[2], (Cin, Cout), jnp.float32) * 0.3

    # Deterministic BatchNorm parameters / running stats (inference mode).
    dw_gamma = 1.0 + 0.1 * jax.random.normal(k[3], (Cin,), jnp.float32)
    dw_beta = 0.1 * jax.random.normal(k[4], (Cin,), jnp.float32)
    dw_mean = 0.05 * jax.random.normal(k[5], (Cin,), jnp.float32)
    dw_var = jnp.abs(jax.random.normal(k[6], (Cin,), jnp.float32)) + 0.5

    pw_gamma = 1.0 + 0.1 * jax.random.normal(k[7], (Cout,), jnp.float32)
    pw_beta = 0.1 * jax.random.normal(k[8], (Cout,), jnp.float32)
    pw_mean = jnp.zeros((Cout,), jnp.float32)
    pw_var = jnp.ones((Cout,), jnp.float32)

    dw_scale, dw_bias = _fold_bn(dw_gamma, dw_beta, dw_mean, dw_var)
    pw_scale, pw_bias = _fold_bn(pw_gamma, pw_beta, pw_mean, pw_var)
    # Conv bias (nn.Conv2d default bias=True) followed by BN folds into the BN
    # bias; modeled as zero here (absorbed into *_bias).

    out = dwconv_forward(x, dw_w, dw_scale, dw_bias, pw_w, pw_scale, pw_bias)
    out = jax.block_until_ready(out)

    ref = _reference(x, dw_w, dw_scale, dw_bias, pw_w, pw_scale, pw_bias)
    assert out.shape == (N, Cout, H, W)
    err = float(jnp.max(jnp.abs(out - ref)))
    assert err < 2e-2, f"mismatch vs reference: {err}"

    print("KERNEL_OK")
</pallas_src>

<mosaic_0001>
module attributes {stable_mosaic.version = 11 : i64} {
  func.func @_dwconv_kernel(%arg0: i32, %arg1: i32, %arg2: i32, %arg3: memref<1x16x18x4xf32, #tpu.memory_space<vmem>>, %arg4: memref<1x2x18x4xf32, #tpu.memory_space<vmem>>, %arg5: memref<9x4xf32, #tpu.memory_space<vmem>>, %arg6: memref<1x4xf32, #tpu.memory_space<vmem>>, %arg7: memref<4x128xbf16, #tpu.memory_space<vmem>>, %arg8: memref<1x128xf32, #tpu.memory_space<vmem>>, %arg9: memref<1x16x16x128xf32, #tpu.memory_space<vmem>>, %arg10: memref<256x4xbf16, #tpu.memory_space<vmem>>) attributes {dimension_semantics = [#tpu.dimension_semantics<parallel>, #tpu.dimension_semantics<parallel>, #tpu.dimension_semantics<arbitrary>], iteration_bounds = array<i64: 2, 1, 1>, scalar_prefetch = 0 : i64, scratch_operands = 1 : i64, tpu.core_type = #tpu.core_type<tc>, window_params = [{transform_indices = @transform_0, window_bounds = array<i64: 1, 16, 18, 4>}, {transform_indices = @transform_1, window_bounds = array<i64: 1, 2, 18, 4>}, {pipeline_mode = #tpu.pipeline_mode<synchronous>, transform_indices = @transform_2, window_bounds = array<i64: 9, 4>}, {pipeline_mode = #tpu.pipeline_mode<synchronous>, transform_indices = @transform_3, window_bounds = array<i64: 1, 4>}, {transform_indices = @transform_4, window_bounds = array<i64: 4, 128>}, {transform_indices = @transform_5, window_bounds = array<i64: 1, 128>}, {transform_indices = @transform_6, window_bounds = array<i64: 1, 16, 16, 128>}]} {
    %c0_i32 = arith.constant 0 : i32
    %0 = arith.cmpi eq, %arg2, %c0_i32 : i32
    %1 = arith.extui %0 : i1 to i32
    %c0_i32_0 = arith.constant 0 : i32
    %2 = arith.cmpi ne, %1, %c0_i32_0 : i32
    scf.if %2 {
      %c0_11 = arith.constant 0 : index
      %c0_12 = arith.constant 0 : index
      %c0_13 = arith.constant 0 : index
      %c0_14 = arith.constant 0 : index
      %17 = vector.load %arg3[%c0_11, %c0_12, %c0_13, %c0_14] : memref<1x16x18x4xf32, #tpu.memory_space<vmem>>, vector<1x16x18x4xf32>
      %18 = vector.shape_cast %17 : vector<1x16x18x4xf32> to vector<16x18x4xf32>
      %c0_15 = arith.constant 0 : index
      %c0_16 = arith.constant 0 : index
      %c0_17 = arith.constant 0 : index
      %c0_18 = arith.constant 0 : index
      %19 = vector.load %arg4[%c0_15, %c0_16, %c0_17, %c0_18] : memref<1x2x18x4xf32, #tpu.memory_space<vmem>>, vector<1x2x18x4xf32>
      %20 = vector.shape_cast %19 : vector<1x2x18x4xf32> to vector<2x18x4xf32>
      %21 = tpu.concatenate %18, %20 in 0 : vector<16x18x4xf32>, vector<2x18x4xf32> -> vector<18x18x4xf32>
      %c0_19 = arith.constant 0 : index
      %c0_20 = arith.constant 0 : index
      %22 = vector.load %arg5[%c0_19, %c0_20] : memref<9x4xf32, #tpu.memory_space<vmem>>, vector<9x4xf32>
      %cst_21 = arith.constant 0.000000e+00 : f32
      %23 = vector.broadcast %cst_21 : f32 to vector<16x16x4xf32>
      %24 = vector.extract_strided_slice %21 {offsets = [0, 0, 0], sizes = [16, 16, 4], strides = [1, 1, 1]} : vector<18x18x4xf32> to vector<16x16x4xf32>
      %25 = vector.extract_strided_slice %22 {offsets = [0, 0], sizes = [1, 4], strides = [1, 1]} : vector<9x4xf32> to vector<1x4xf32>
      %26 = vector.shape_cast %25 : vector<1x4xf32> to vector<4xf32>
      %27 = vector.shape_cast %26 : vector<4xf32> to vector<1x1x4xf32>
      %28 = vector.broadcast %27 : vector<1x1x4xf32> to vector<16x16x4xf32>
      %29 = arith.mulf %24, %28 : vector<16x16x4xf32>
      %30 = arith.addf %23, %29 : vector<16x16x4xf32>
      %31 = vector.extract_strided_slice %21 {offsets = [0, 1, 0], sizes = [16, 16, 4], strides = [1, 1, 1]} : vector<18x18x4xf32> to vector<16x16x4xf32>
      %32 = vector.extract_strided_slice %22 {offsets = [1, 0], sizes = [1, 4], strides = [1, 1]} : vector<9x4xf32> to vector<1x4xf32>
      %33 = vector.shape_cast %32 : vector<1x4xf32> to vector<4xf32>
      %34 = vector.shape_cast %33 : vector<4xf32> to vector<1x1x4xf32>
      %35 = vector.broadcast %34 : vector<1x1x4xf32> to vector<16x16x4xf32>
      %36 = arith.mulf %31, %35 : vector<16x16x4xf32>
      %37 = arith.addf %30, %36 : vector<16x16x4xf32>
      %38 = vector.extract_strided_slice %21 {offsets = [0, 2, 0], sizes = [16, 16, 4], strides = [1, 1, 1]} : vector<18x18x4xf32> to vector<16x16x4xf32>
      %39 = vector.extract_strided_slice %22 {offsets = [2, 0], sizes = [1, 4], strides = [1, 1]} : vector<9x4xf32> to vector<1x4xf32>
      %40 = vector.shape_cast %39 : vector<1x4xf32> to vector<4xf32>
      %41 = vector.shape_cast %40 : vector<4xf32> to vector<1x1x4xf32>
      %42 = vector.broadcast %41 : vector<1x1x4xf32> to vector<16x16x4xf32>
      %43 = arith.mulf %38, %42 : vector<16x16x4xf32>
      %44 = arith.addf %37, %43 : vector<16x16x4xf32>
      %45 = vector.extract_strided_slice %21 {offsets = [1, 0, 0], sizes = [16, 16, 4], strides = [1, 1, 1]} : vector<18x18x4xf32> to vector<16x16x4xf32>
      %46 = vector.extract_strided_slice %22 {offsets = [3, 0], sizes = [1, 4], strides = [1, 1]} : vector<9x4xf32> to vector<1x4xf32>
      %47 = vector.shape_cast %46 : vector<1x4xf32> to vector<4xf32>
      %48 = vector.shape_cast %47 : vector<4xf32> to vector<1x1x4xf32>
      %49 = vector.broadcast %48 : vector<1x1x4xf32> to vector<16x16x4xf32>
      %50 = arith.mulf %45, %49 : vector<16x16x4xf32>
      %51 = arith.addf %44, %50 : vector<16x16x4xf32>
      %52 = vector.extract_strided_slice %21 {offsets = [1, 1, 0], sizes = [16, 16, 4], strides = [1, 1, 1]} : vector<18x18x4xf32> to vector<16x16x4xf32>
      %53 = vector.extract_strided_slice %22 {offsets = [4, 0], sizes = [1, 4], strides = [1, 1]} : vector<9x4xf32> to vector<1x4xf32>
      %54 = vector.shape_cast %53 : vector<1x4xf32> to vector<4xf32>
      %55 = vector.shape_cast %54 : vector<4xf32> to vector<1x1x4xf32>
      %56 = vector.broadcast %55 : vector<1x1x4xf32> to vector<16x16x4xf32>
      %57 = arith.mulf %52, %56 : vector<16x16x4xf32>
      %58 = arith.addf %51, %57 : vector<16x16x4xf32>
      %59 = vector.extract_strided_slice %21 {offsets = [1, 2, 0], sizes = [16, 16, 4], strides = [1, 1, 1]} : vector<18x18x4xf32> to vector<16x16x4xf32>
      %60 = vector.extract_strided_slice %22 {offsets = [5, 0], sizes = [1, 4], strides = [1, 1]} : vector<9x4xf32> to vector<1x4xf32>
      %61 = vector.shape_cast %60 : vector<1x4xf32> to vector<4xf32>
      %62 = vector.shape_cast %61 : vector<4xf32> to vector<1x1x4xf32>
      %63 = vector.broadcast %62 : vector<1x1x4xf32> to vector<16x16x4xf32>
      %64 = arith.mulf %59, %63 : vector<16x16x4xf32>
      %65 = arith.addf %58, %64 : vector<16x16x4xf32>
      %66 = vector.extract_strided_slice %21 {offsets = [2, 0, 0], sizes = [16, 16, 4], strides = [1, 1, 1]} : vector<18x18x4xf32> to vector<16x16x4xf32>
      %67 = vector.extract_strided_slice %22 {offsets = [6, 0], sizes = [1, 4], strides = [1, 1]} : vector<9x4xf32> to vector<1x4xf32>
      %68 = vector.shape_cast %67 : vector<1x4xf32> to vector<4xf32>
      %69 = vector.shape_cast %68 : vector<4xf32> to vector<1x1x4xf32>
      %70 = vector.broadcast %69 : vector<1x1x4xf32> to vector<16x16x4xf32>
      %71 = arith.mulf %66, %70 : vector<16x16x4xf32>
      %72 = arith.addf %65, %71 : vector<16x16x4xf32>
      %73 = vector.extract_strided_slice %21 {offsets = [2, 1, 0], sizes = [16, 16, 4], strides = [1, 1, 1]} : vector<18x18x4xf32> to vector<16x16x4xf32>
      %74 = vector.extract_strided_slice %22 {offsets = [7, 0], sizes = [1, 4], strides = [1, 1]} : vector<9x4xf32> to vector<1x4xf32>
      %75 = vector.shape_cast %74 : vector<1x4xf32> to vector<4xf32>
      %76 = vector.shape_cast %75 : vector<4xf32> to vector<1x1x4xf32>
      %77 = vector.broadcast %76 : vector<1x1x4xf32> to vector<16x16x4xf32>
      %78 = arith.mulf %73, %77 : vector<16x16x4xf32>
      %79 = arith.addf %72, %78 : vector<16x16x4xf32>
      %80 = vector.extract_strided_slice %21 {offsets = [2, 2, 0], sizes = [16, 16, 4], strides = [1, 1, 1]} : vector<18x18x4xf32> to vector<16x16x4xf32>
      %81 = vector.extract_strided_slice %22 {offsets = [8, 0], sizes = [1, 4], strides = [1, 1]} : vector<9x4xf32> to vector<1x4xf32>
      %82 = vector.shape_cast %81 : vector<1x4xf32> to vector<4xf32>
      %83 = vector.shape_cast %82 : vector<4xf32> to vector<1x1x4xf32>
      %84 = vector.broadcast %83 : vector<1x1x4xf32> to vector<16x16x4xf32>
      %85 = arith.mulf %80, %84 : vector<16x16x4xf32>
      %86 = arith.addf %79, %85 : vector<16x16x4xf32>
      %c0_22 = arith.constant 0 : index
      %c0_23 = arith.constant 0 : index
      %87 = vector.load %arg6[%c0_22, %c0_23] : memref<1x4xf32, #tpu.memory_space<vmem>>, vector<1x4xf32>
      %88 = vector.shape_cast %87 : vector<1x4xf32> to vector<4xf32>
      %89 = vector.shape_cast %88 : vector<4xf32> to vector<1x1x4xf32>
      %90 = vector.broadcast %89 : vector<1x1x4xf32> to vector<16x16x4xf32>
      %91 = arith.addf %86, %90 : vector<16x16x4xf32>
      %cst_24 = arith.constant 0.000000e+00 : f32
      %92 = vector.broadcast %cst_24 : f32 to vector<16x16x4xf32>
      %93 = arith.maximumf %91, %92 : vector<16x16x4xf32>
      %94 = vector.shape_cast %93 : vector<16x16x4xf32> to vector<256x4xf32>
      %95 = arith.truncf %94 : vector<256x4xf32> to vector<256x4xbf16>
      %c0_25 = arith.constant 0 : index
      %c0_26 = arith.constant 0 : index
      %96 = vector.load %arg10[%c0_25, %c0_26] : memref<256x4xbf16, #tpu.memory_space<vmem>>, vector<256x4xbf16>
      tpu.vector_store %arg10[%c0_25, %c0_26], %95 {strides = array<i32>} : memref<256x4xbf16, #tpu.memory_space<vmem>>, vector<256x4xbf16>,
    } else {
    }
    %c0 = arith.constant 0 : index
    %c0_1 = arith.constant 0 : index
    %3 = vector.load %arg10[%c0, %c0_1] : memref<256x4xbf16, #tpu.memory_space<vmem>>, vector<256x4xbf16>
    %c0_2 = arith.constant 0 : index
    %c0_3 = arith.constant 0 : index
    %4 = vector.load %arg7[%c0_2, %c0_3] : memref<4x128xbf16, #tpu.memory_space<vmem>>, vector<4x128xbf16>
    %cst = arith.constant dense<0.000000e+00> : vector<256x128xf32>
    %5 = tpu.matmul %3, %4, %cst {dimension_numbers = #tpu.dot_dimension_numbers<[1], [0], [0], [1], [0, 0, 1, 1], [], []>} : vector<256x4xbf16>, vector<4x128xbf16>, vector<256x128xf32> -> vector<256x128xf32>
    %c0_4 = arith.constant 0 : index
    %c0_5 = arith.constant 0 : index
    %6 = vector.load %arg8[%c0_4, %c0_5] : memref<1x128xf32, #tpu.memory_space<vmem>>, vector<1x128xf32>
    %7 = vector.shape_cast %6 : vector<1x128xf32> to vector<128xf32>
    %8 = vector.shape_cast %7 : vector<128xf32> to vector<1x128xf32>
    %9 = vector.broadcast %8 : vector<1x128xf32> to vector<256x128xf32>
    %10 = arith.addf %5, %9 : vector<256x128xf32>
    %cst_6 = arith.constant 0.000000e+00 : f32
    %11 = vector.broadcast %cst_6 : f32 to vector<256x128xf32>
    %12 = arith.maximumf %10, %11 : vector<256x128xf32>
    %13 = vector.shape_cast %12 : vector<256x128xf32> to vector<16x16x128xf32>
    %c0_7 = arith.constant 0 : index
    %c0_8 = arith.constant 0 : index
    %c0_9 = arith.constant 0 : index
    %c0_10 = arith.constant 0 : index
    %14 = vector.load %arg9[%c0_7, %c0_8, %c0_9, %c0_10] : memref<1x16x16x128xf32, #tpu.memory_space<vmem>>, vector<1x16x16x128xf32>
    %15 = vector.shape_cast %14 : vector<1x16x16x128xf32> to vector<16x16x128xf32>
    %16 = vector.shape_cast %13 : vector<16x16x128xf32> to vector<1x16x16x128xf32>
    tpu.vector_store %arg9[%c0_7, %c0_8, %c0_9, %c0_10], %16 {strides = array<i32>} : memref<1x16x16x128xf32, #tpu.memory_space<vmem>>, vector<1x16x16x128xf32>,
    return
  }
  func.func @transform_0(%arg0: i32, %arg1: i32, %arg2: i32) -> (i32, i32, i32, i32) {
    %c0_i32 = arith.constant 0 : i32
    %c0_i32_0 = arith.constant 0 : i32
    %c0_i32_1 = arith.constant 0 : i32
    return %arg0, %arg1, %c0_i32, %c0_i32_0 : i32, i32, i32, i32
  }
  func.func @transform_1(%arg0: i32, %arg1: i32, %arg2: i32) -> (i32, i32, i32, i32) {
    %c1_i32 = arith.constant 1 : i32
    %0 = arith.addi %arg1, %c1_i32 : i32
    %c8_i32 = arith.constant 8 : i32
    %1 = arith.muli %0, %c8_i32 : i32
    %c0_i32 = arith.constant 0 : i32
    %c0_i32_0 = arith.constant 0 : i32
    %c0_i32_1 = arith.constant 0 : i32
    return %arg0, %1, %c0_i32, %c0_i32_0 : i32, i32, i32, i32
  }
  func.func @transform_2(%arg0: i32, %arg1: i32, %arg2: i32) -> (i32, i32) {
    %c0_i32 = arith.constant 0 : i32
    %c0_i32_0 = arith.constant 0 : i32
    %c0_i32_1 = arith.constant 0 : i32
    return %c0_i32, %c0_i32_0 : i32, i32
  }
  func.func @transform_3(%arg0: i32, %arg1: i32, %arg2: i32) -> (i32, i32) {
    %c0_i32 = arith.constant 0 : i32
    %c0_i32_0 = arith.constant 0 : i32
    %c0_i32_1 = arith.constant 0 : i32
    return %c0_i32, %c0_i32_0 : i32, i32
  }
  func.func @transform_4(%arg0: i32, %arg1: i32, %arg2: i32) -> (i32, i32) {
    %c0_i32 = arith.constant 0 : i32
    %c0_i32_0 = arith.constant 0 : i32
    return %c0_i32, %arg2 : i32, i32
  }
  func.func @transform_5(%arg0: i32, %arg1: i32, %arg2: i32) -> (i32, i32) {
    %c0_i32 = arith.constant 0 : i32
    %c0_i32_0 = arith.constant 0 : i32
    return %c0_i32, %arg2 : i32, i32
  }
  func.func @transform_6(%arg0: i32, %arg1: i32, %arg2: i32) -> (i32, i32, i32, i32) {
    %c0_i32 = arith.constant 0 : i32
    %c0_i32_0 = arith.constant 0 : i32
    return %arg0, %arg1, %c0_i32, %arg2 : i32, i32, i32, i32
  }
}

</mosaic_0001>

<llo_original>
// kernel: dwconv_forward.1
$region0: #{dwconv_forward.1}
  #allocation0 [shape = 'u32[]', space=smem, size = 0x4, offset = 0x4, fixed_abs, tag = 'smem constant byte address 0x4 - core index']
  #allocation1 [shape = 'u32[72,128]{1,0:T(1,128)}', space=vmem, size = 0x9000, scoped, tag = 'internal scratch']
  #allocation2 [shape = 'bf16[256,4]{1,0:T(8,128)(2,1)}', space=vmem, size = 0x10000, scoped, tag = 'scratch operand']
  %s0 = inlined_call_operand.vmem [shape: f32[2,18,18,4], index: 0, kind: input, shape index: {}, may-alias: {0,1}]
  %s1 = inlined_call_operand.vmem [shape: f32[2,18,18,4], index: 1, kind: input, shape index: {}, may-alias: {0,1}]
  %s2 = inlined_call_operand.vmem [shape: f32[9,4], index: 2, kind: input, shape index: {}]
  %s3 = inlined_call_operand.vmem [shape: f32[1,4], index: 3, kind: input, shape index: {}]
  %s4 = inlined_call_operand.vmem [shape: bf16[4,128], index: 4, kind: input, shape index: {}]
  %s5 = inlined_call_operand.vmem [shape: f32[1,128], index: 5, kind: input, shape index: {}]
  %s6 = inlined_call_operand.vmem [shape: f32[2,16,16,128], index: 6, kind: output, shape index: {}]
  %s7 = sld [smem:[#allocation0]]
  $region61: #{dwconv_forward.1} parent=0
    _
  %s9 = ssub.s32 1, %s7
  %s10 = scalar_select 0, %s9, %s7
  loop: start=0, step=1, limit=4
  $region2: #{dwconv_forward.1} parent=0 // loop_pre_header
    _
  $region3: #{dwconv_forward.1} parent=0 // loop_header
    %s12 = sphi 0, %s16
    %p13 = scmp.ge.s32.totalorder %s12, 4
    %s19 = sphi 0, %s38
    %s20 = sphi 0, %s34
    %s21 = sphi 0, %s30
    %s22 = sphi 0, %s19
    %s23 = sphi 0, %s20
    %s24 = sphi 0, %s21
    %s25 = sphi 0, %s22
    %s26 = sphi 0, %s23
    %s27 = sphi 0, %s24
    %s43 = sphi 0, %s45
    %s46 = sphi 0, %s43
    %s47 = sphi 0, %s46
    %s63 = sphi 0, %s47
    %s75 = sphi 0, %s77
    %s78 = sphi 0, %s75
    %s79 = sphi 0, %s78
    %s95 = sphi 0, %s79
    %s99 = sphi 0, %s99
    %s101 = sphi 0, %s99
    %s102 = sphi 0, %s101
    %s116 = sphi 0, %s102
    %s120 = sphi 0, %s120
    %s122 = sphi 0, %s120
    %s123 = sphi 0, %s122
    %s137 = sphi 0, %s123
    %s143 = sphi 0, %s145
    %s146 = sphi 0, %s143
    %s147 = sphi 0, %s146
    %s163 = sphi 0, %s147
    %s169 = sphi 0, %s171
    %s172 = sphi 0, %s169
    %s173 = sphi 0, %s172
    %s189 = sphi 0, %s173
    %s199 = sphi 0, %s201
    %s202 = sphi 0, %s199
    %s203 = sphi 0, %s202
    %s219 = sphi 0, %s203
  $region4: #{dwconv_forward.1} parent=0 // loop_header_branch
    %15 = sbr.rel (%p13) target = $region8
  $region5: #{dwconv_forward.1} parent=0 // loop_body
    %s17 = ssub.s32 %s12, 1
    %s18 = ssub.s32 %s12, 2
    %s28 = sadd.s32 1, %s21
    %p29 = scmp.ge.s32.totalorder %s28, 1
    %s30 = scalar_select %p29, 0, %s28
    %s31 = sadd.s32 1, %s20
    %s32 = scalar_select %p29, %s31, %s20
    %p33 = scmp.ge.s32.totalorder %s32, 1
    %s34 = scalar_select %p33, 0, %s32
    %s35 = sadd.s32 1, %s19
    %s36 = scalar_select %p33, %s35, %s19
    %p37 = scmp.ge.s32.totalorder %s36, 2
    %s38 = scalar_select %p37, 0, %s36
    %s39 = ssub.s32 %s19, %s38
    %s40 = ssub.s32 %s20, %s34
    %s41 = sor.u32 %s39, %s40
    %p42 = scmp.eq.s32.totalorder %s41, 0
    %s44 = sadd.s32 %s43, 1
    %s45 = scalar_select %p42, %s43, %s44
    %p48 = pneg %p42
    %p49 = scmp.eq.s32.totalorder %s12, 1
    %p50 = por %p48, %p49
    %p51 = scmp.ne.s32.totalorder %s43, %s46
    %p52 = scmp.eq.s32.totalorder %s12, 0
    %p53 = por %p51, %p52
    %p54 = scmp.ne.s32.totalorder %s43, %s46
    %p55 = scmp.eq.s32.totalorder %s17, 1
    %p56 = por %p54, %p55
    %p57 = scmp.ne.s32.totalorder %s46, %s47
    %p58 = scmp.eq.s32.totalorder %s17, 0
    %p59 = por %p57, %p58
    %p60 = scmp.ne.s32.totalorder %s46, %s47
    %p61 = scmp.eq.s32.totalorder %s18, 1
    %p62 = por %p60, %p61
    %p64 = scmp.ne.s32.totalorder %s47, %s63
    %p65 = scmp.eq.s32.totalorder %s18, 0
    %p66 = por %p64, %p65
    %s67 = sadd.s32 %s20, 1
    %s68 = smul.u32 %s67, 8
    %s69 = sadd.s32 %s34, 1
    %s70 = smul.u32 %s69, 8
    %s71 = ssub.s32 %s19, %s38
    %s72 = ssub.s32 %s68, %s70
    %s73 = sor.u32 %s71, %s72
    %p74 = scmp.eq.s32.totalorder %s73, 0
    %s76 = sadd.s32 %s75, 1
    %s77 = scalar_select %p74, %s75, %s76
    %p80 = pneg %p74
    %p81 = scmp.eq.s32.totalorder %s12, 1
    %p82 = por %p80, %p81
    %p83 = scmp.ne.s32.totalorder %s75, %s78
    %p84 = scmp.eq.s32.totalorder %s12, 0
    %p85 = por %p83, %p84
    %p86 = scmp.ne.s32.totalorder %s75, %s78
    %p87 = scmp.eq.s32.totalorder %s17, 1
    %p88 = por %p86, %p87
    %p89 = scmp.ne.s32.totalorder %s78, %s79
    %p90 = scmp.eq.s32.totalorder %s17, 0
    %p91 = por %p89, %p90
    %p92 = scmp.ne.s32.totalorder %s78, %s79
    %p93 = scmp.eq.s32.totalorder %s18, 1
    %p94 = por %p92, %p93
    %p96 = scmp.ne.s32.totalorder %s79, %s95
    %p97 = scmp.eq.s32.totalorder %s18, 0
    %p98 = por %p96, %p97
    %s100 = sadd.s32 %s99, 1
    %p103 = scmp.eq.s32.totalorder %s12, 1
    %p104 = scmp.ne.s32.totalorder %s99, %s101
    %p105 = scmp.eq.s32.totalorder %s12, 0
    %p106 = por %p104, %p105
    %p107 = scmp.ne.s32.totalorder %s99, %s101
    %p108 = scmp.eq.s32.totalorder %s17, 1
    %p109 = por %p107, %p108
    %p110 = scmp.ne.s32.totalorder %s101, %s102
    %p111 = scmp.eq.s32.totalorder %s17, 0
    %p112 = por %p110, %p111
    %p113 = scmp.ne.s32.totalorder %s101, %s102
    %p114 = scmp.eq.s32.totalorder %s18, 1
    %p115 = por %p113, %p114
    %p117 = scmp.ne.s32.totalorder %s102, %s116
    %p118 = scmp.eq.s32.totalorder %s18, 0
    %p119 = por %p117, %p118
    %s121 = sadd.s32 %s120, 1
    %p124 = scmp.eq.s32.totalorder %s12, 1
    %p125 = scmp.ne.s32.totalorder %s120, %s122
    %p126 = scmp.eq.s32.totalorder %s12, 0
    %p127 = por %p125, %p126
    %p128 = scmp.ne.s32.totalorder %s120, %s122
    %p129 = scmp.eq.s32.totalorder %s17, 1
    %p130 = por %p128, %p129
    %p131 = scmp.ne.s32.totalorder %s122, %s123
    %p132 = scmp.eq.s32.totalorder %s17, 0
    %p133 = por %p131, %p132
    %p134 = scmp.ne.s32.totalorder %s122, %s123
    %p135 = scmp.eq.s32.totalorder %s18, 1
    %p136 = por %p134, %p135
    %p138 = scmp.ne.s32.totalorder %s123, %s137
    %p139 = scmp.eq.s32.totalorder %s18, 0
    %p140 = por %p138, %p139
    %s141 = ssub.s32 %s21, %s30
    %p142 = scmp.eq.s32.totalorder %s141, 0
    %s144 = sadd.s32 %s143, 1
    %s145 = scalar_select %p142, %s143, %s144
    %p148 = pneg %p142
    %p149 = scmp.eq.s32.totalorder %s12, 1
    %p150 = por %p148, %p149
    %p151 = scmp.ne.s32.totalorder %s143, %s146
    %p152 = scmp.eq.s32.totalorder %s12, 0
    %p153 = por %p151, %p152
    %p154 = scmp.ne.s32.totalorder %s143, %s146
    %p155 = scmp.eq.s32.totalorder %s17, 1
    %p156 = por %p154, %p155
    %p157 = scmp.ne.s32.totalorder %s146, %s147
    %p158 = scmp.eq.s32.totalorder %s17, 0
    %p159 = por %p157, %p158
    %p160 = scmp.ne.s32.totalorder %s146, %s147
    %p161 = scmp.eq.s32.totalorder %s18, 1
    %p162 = por %p160, %p161
    %p164 = scmp.ne.s32.totalorder %s147, %s163
    %p165 = scmp.eq.s32.totalorder %s18, 0
    %p166 = por %p164, %p165
    %s167 = ssub.s32 %s21, %s30
    %p168 = scmp.eq.s32.totalorder %s167, 0
    %s170 = sadd.s32 %s169, 1
    %s171 = scalar_select %p168, %s169, %s170
    %p174 = pneg %p168
    %p175 = scmp.eq.s32.totalorder %s12, 1
    %p176 = por %p174, %p175
    %p177 = scmp.ne.s32.totalorder %s169, %s172
    %p178 = scmp.eq.s32.totalorder %s12, 0
    %p179 = por %p177, %p178
    %p180 = scmp.ne.s32.totalorder %s169, %s172
    %p181 = scmp.eq.s32.totalorder %s17, 1
    %p182 = por %p180, %p181
    %p183 = scmp.ne.s32.totalorder %s172, %s173
    %p184 = scmp.eq.s32.totalorder %s17, 0
    %p185 = por %p183, %p184
    %p186 = scmp.ne.s32.totalorder %s172, %s173
    %p187 = scmp.eq.s32.totalorder %s18, 1
    %p188 = por %p186, %p187
    %p190 = scmp.ne.s32.totalorder %s173, %s189
    %p191 = scmp.eq.s32.totalorder %s18, 0
    %p192 = por %p190, %p191
    %s193 = ssub.s32 %s19, %s38
    %s194 = ssub.s32 %s20, %s34
    %s195 = sor.u32 %s193, %s194
    %s196 = ssub.s32 %s21, %s30
    %s197 = sor.u32 %s195, %s196
    %p198 = scmp.eq.s32.totalorder %s197, 0
    %s200 = sadd.s32 %s199, 1
    %s201 = scalar_select %p198, %s199, %s200
    %p204 = pneg %p198
    %p205 = scmp.eq.s32.totalorder %s12, 1
    %p206 = por %p204, %p205
    %p207 = scmp.ne.s32.totalorder %s199, %s202
    %p208 = scmp.eq.s32.totalorder %s12, 0
    %p209 = por %p207, %p208
    %p210 = scmp.ne.s32.totalorder %s199, %s202
    %p211 = scmp.eq.s32.totalorder %s17, 1
    %p212 = por %p210, %p211
    %p213 = scmp.ne.s32.totalorder %s202, %s203
    %p214 = scmp.eq.s32.totalorder %s17, 0
    %p215 = por %p213, %p214
    %p216 = scmp.ne.s32.totalorder %s202, %s203
    %p217 = scmp.eq.s32.totalorder %s18, 1
    %p218 = por %p216, %p217
    %p220 = scmp.ne.s32.totalorder %s203, %s219
    %p221 = scmp.eq.s32.totalorder %s18, 0
    %p222 = por %p220, %p221
    %p223 = scmp.le.s32.totalorder 1, %s12
    %p224 = scmp.lt.s32.totalorder %s12, 3
    %p225 = pnand %p223, %p224
    %p226 = pneg %p225
    // Predicated region
    $region9: #{dwconv_forward.1} parent=5 // pred_check
      _
    $region10: #{dwconv_forward.1} parent=5 // pred_check_branch
      %228 = sbr.rel (%p225) target = $region12
    $region11: #{dwconv_forward.1} parent=5 // pred_region
      %s229 = ssub.s32 %s12, 1
      // Predicated region
      $region13: #{dwconv_forward.1} parent=11 // pred_check
        %p230 = pneg %p112
      $region14: #{dwconv_forward.1} parent=11 // pred_check_branch
        %232 = sbr.rel (%p230) target = $region16
      $region15: #{dwconv_forward.1} parent=11 // pred_region
        _
      $region16: #{dwconv_forward.1} parent=11 // pred_fallthru
        _
      // Predicated region
      $region17: #{dwconv_forward.1} parent=11 // pred_check
        %p233 = pneg %p133
      $region18: #{dwconv_forward.1} parent=11 // pred_check_branch
        %235 = sbr.rel (%p233) target = $region20
      $region19: #{dwconv_forward.1} parent=11 // pred_region
        _
      $region20: #{dwconv_forward.1} parent=11 // pred_fallthru
        _
      // Predicated region
      $region21: #{dwconv_forward.1} parent=11 // pred_check
        %p236 = pneg %p159
      $region22: #{dwconv_forward.1} parent=11 // pred_check_branch
        %238 = sbr.rel (%p236) target = $region24
      $region23: #{dwconv_forward.1} parent=11 // pred_region
        %p239 = scmp.lt.s32.totalorder %s24, 0
        %s240 = scalar_select %p239, %s24, 0
        %s241 = smul.addr %s240, 2
        %s242 = scalar_lea.vmem %s4, %s241
      $region24: #{dwconv_forward.1} parent=11 // pred_fallthru
        _
      // Predicated region
      $region25: #{dwconv_forward.1} parent=11 // pred_check
        %p243 = pneg %p185
      $region26: #{dwconv_forward.1} parent=11 // pred_check_branch
        %245 = sbr.rel (%p243) target = $region28
      $region27: #{dwconv_forward.1} parent=11 // pred_region
        %p246 = scmp.lt.s32.totalorder %s24, 0
        %s247 = scalar_select %p246, %s24, 0
        %s248 = scalar_lea.vmem %s5, %s247
      $region28: #{dwconv_forward.1} parent=11 // pred_fallthru
        _
    $region12: #{dwconv_forward.1} parent=5 // pred_fallthru
      _
    %p249 = scmp.lt.s32.totalorder %s12, 2
    // Predicated region
    $region29: #{dwconv_forward.1} parent=5 // pred_check
      %p250 = pneg %p249
    $region30: #{dwconv_forward.1} parent=5 // pred_check_branch
      %252 = sbr.rel (%p250) target = $region32
    $region31: #{dwconv_forward.1} parent=5 // pred_region
      // Predicated region
      $region33: #{dwconv_forward.1} parent=31 // pred_check
        %p253 = pneg %p53
      $region34: #{dwconv_forward.1} parent=31 // pred_check_branch
        %255 = sbr.rel (%p253) target = $region36
      $region35: #{dwconv_forward.1} parent=31 // pred_region
        %s256 = smul.u32 16, %s20
        %s257 = ssub.s32 18, %s256
        %p258 = scmp.lt.s32.totalorder %s257, 16
        %s259 = scalar_select %p258, %s257, 16
        %s260 = smul.u32 8, %s259
        %s261 = smul.u32 %s260, 3
        %p262 = scmp.lt.s32.totalorder %s19, 1
        %s263 = scalar_select %p262, %s19, 1
        %p264 = scmp.lt.s32.totalorder %s256, 17
        %s265 = scalar_select %p264, %s256, 17
        %s266 = smul.addr %s265, 3
        %s267 = smul.addr %s263, 54
        %s268 = sadd.s32 %s266, %s267
        %s269 = smul.addr %s268, 8
        %s270 = scalar_lea.vmem %s0, %s269
        %s271 = smul.u32 16, %s20
        %s272 = ssub.s32 18, %s271
        %p273 = scmp.lt.s32.totalorder %s272, 16
        %s274 = scalar_select %p273, %s272, 16
        %s275 = smul.u32 8, %s274
        %s276 = smul.u32 %s275, 3
      $region36: #{dwconv_forward.1} parent=31 // pred_fallthru
        _
      // Predicated region
      $region37: #{dwconv_forward.1} parent=31 // pred_check
        %p277 = pneg %p85
      $region38: #{dwconv_forward.1} parent=31 // pred_check_branch
        %279 = sbr.rel (%p277) target = $region40
      $region39: #{dwconv_forward.1} parent=31 // pred_region
        %s280 = sadd.s32 %s20, 1
        %s281 = smul.u32 %s280, 8
        %s282 = smul.u32 2, %s281
        %p283 = scmp.lt.s32.totalorder %s19, 1
        %s284 = scalar_select %p283, %s19, 1
        %p285 = scmp.lt.s32.totalorder %s282, 17
        %s286 = scalar_select %p285, %s282, 17
        %s287 = smul.addr %s286, 3
        %s288 = smul.addr %s284, 54
        %s289 = sadd.s32 %s287, %s288
        %s290 = smul.addr %s289, 8
        %s291 = scalar_lea.vmem %s1, %s290
        %s292 = sadd.s32 %s20, 1
        %s293 = smul.u32 %s292, 8
        %s294 = smul.u32 2, %s293
      $region40: #{dwconv_forward.1} parent=31 // pred_fallthru
        _
    $region32: #{dwconv_forward.1} parent=5 // pred_fallthru
      _
    %p295 = scmp.le.s32.totalorder 1, %s12
    %p296 = scmp.lt.s32.totalorder %s12, 3
    %p297 = pnand %p295, %p296
    %p298 = pneg %p297
    // Predicated region
    $region41: #{dwconv_forward.1} parent=5 // pred_check
      _
    $region42: #{dwconv_forward.1} parent=5 // pred_check_branch
      %300 = sbr.rel (%p297) target = $region44
    $region43: #{dwconv_forward.1} parent=5 // pred_region
      %s301 = ssub.s32 %s12, 1
      %s302 = smul.u32 16, %s23
      %s303 = ssub.s32 18, %s302
      %p304 = scmp.lt.s32.totalorder %s303, 16
      %s305 = scalar_select %p304, %s303, 16
      %s306 = smul.u32 8, %s305
      %s307 = smul.u32 %s306, 3
      %p308 = scmp.lt.s32.totalorder %s22, 1
      %s309 = scalar_select %p308, %s22, 1
      %p310 = scmp.lt.s32.totalorder %s302, 17
      %s311 = scalar_select %p310, %s302, 17
      %s312 = smul.addr %s311, 3
      %s313 = smul.addr %s309, 54
      %s314 = sadd.s32 %s312, %s313
      %s315 = smul.addr %s314, 8
      %s316 = scalar_lea.vmem %s0, %s315
      %p317 = pneg %p59
      %p318 = pneg %p56
      %s319 = sadd.s32 %s23, 1
      %s320 = smul.u32 %s319, 8
      %s321 = smul.u32 2, %s320
      %p322 = scmp.lt.s32.totalorder %s22, 1
      %s323 = scalar_select %p322, %s22, 1
      %p324 = scmp.lt.s32.totalorder %s321, 17
      %s325 = scalar_select %p324, %s321, 17
      %s326 = smul.addr %s325, 3
      %s327 = smul.addr %s323, 54
      %s328 = sadd.s32 %s326, %s327
      %s329 = smul.addr %s328, 8
      %s330 = scalar_lea.vmem %s1, %s329
      %p331 = pneg %p91
      %p332 = pneg %p88
      %p333 = pneg %p112
      %p334 = pneg %p109
      %p335 = pneg %p133
      %p336 = pneg %p130
      %p337 = scmp.lt.s32.totalorder %s24, 0
      %s338 = scalar_select %p337, %s24, 0
      %s339 = smul.addr %s338, 2
      %s340 = scalar_lea.vmem %s4, %s339
      %p341 = pneg %p159
      %p342 = pneg %p156
      %p343 = scmp.lt.s32.totalorder %s24, 0
      %s344 = scalar_select %p343, %s24, 0
      %s345 = scalar_lea.vmem %s5, %s344
      %p346 = pneg %p185
      %p347 = pneg %p182
      %p348 = pneg %p215
      %p349 = pneg %p212
      %s350 = smul.u32 16, %s23
      %p351 = scmp.lt.s32.totalorder %s22, 1
      %s352 = scalar_select %p351, %s22, 1
      %p353 = scmp.lt.s32.totalorder %s350, 15
      %s354 = scalar_select %p353, %s350, 15
      %p355 = scmp.lt.s32.totalorder %s24, 0
      %s356 = scalar_select %p355, %s24, 0
      %s357 = smul.addr %s354, 2
      %s358 = sadd.s32 %s356, %s357
      %s359 = smul.addr %s352, 32
      %s360 = sadd.s32 %s358, %s359
      %s361 = smul.addr %s360, 8
      %s362 = scalar_lea.vmem %s6, %s361
      %s363 = smul.u32 16, %s23
      %s364 = ssub.s32 18, %s363
      %p365 = scmp.lt.s32.totalorder %s364, 16
      %s366 = scalar_select %p365, %s364, 16
      %s367 = smul.u32 8, %s366
      %s368 = smul.u32 %s367, 3
      %p369 = scmp.lt.s32.totalorder %s22, 1
      %s370 = scalar_select %p369, %s22, 1
      %p371 = scmp.lt.s32.totalorder %s363, 17
      %s372 = scalar_select %p371, %s363, 17
      %s373 = smul.addr %s372, 3
      %s374 = smul.addr %s370, 54
      %s375 = sadd.s32 %s373, %s374
      %s376 = smul.addr %s375, 8
      %s377 = scalar_lea.vmem %s0, %s376
      %s378 = smul.u32 16, %s23
      %s379 = ssub.s32 18, %s378
      %p380 = scmp.lt.s32.totalorder %s379, 16
      %s381 = scalar_select %p380, %s379, 16
      %s382 = smul.u32 8, %s381
      %s383 = smul.u32 %s382, 3
      %s384 = sadd.s32 %s23, 1
      %s385 = smul.u32 %s384, 8
      %s386 = smul.u32 2, %s385
      %p387 = scmp.lt.s32.totalorder %s22, 1
      %s388 = scalar_select %p387, %s22, 1
      %p389 = scmp.lt.s32.totalorder %s386, 17
      %s390 = scalar_select %p389, %s386, 17
      %s391 = smul.addr %s390, 3
      %s392 = smul.addr %s388, 54
      %s393 = sadd.s32 %s391, %s392
      %s394 = smul.addr %s393, 8
      %s395 = scalar_lea.vmem %s1, %s394
      %s396 = sadd.s32 %s23, 1
      %s397 = smul.u32 %s396, 8
      %s398 = smul.u32 2, %s397
      %p399 = scmp.lt.s32.totalorder %s24, 0
      %s400 = scalar_select %p399, %s24, 0
      %s401 = smul.addr %s400, 2
      %s402 = scalar_lea.vmem %s4, %s401
      %p403 = scmp.lt.s32.totalorder %s24, 0
      %s404 = scalar_select %p403, %s24, 0
      %s405 = scalar_lea.vmem %s5, %s404
      %s406 = smul.u32 16, %s23
      %p407 = scmp.lt.s32.totalorder %s22, 1
      %s408 = scalar_select %p407, %s22, 1
      %p409 = scmp.lt.s32.totalorder %s406, 15
      %s410 = scalar_select %p409, %s406, 15
      %p411 = scmp.lt.s32.totalorder %s24, 0
      %s412 = scalar_select %p411, %s24, 0
      %s413 = smul.addr %s410, 2
      %s414 = sadd.s32 %s412, %s413
      %s415 = smul.addr %s408, 32
      %s416 = sadd.s32 %s414, %s415
      %s417 = smul.addr %s416, 8
      %s418 = scalar_lea.vmem %s6, %s417
      %s419 = smul.u32 16, %s23
      %p421 = scmp.eq.s32.totalorder %s24, 0
      // Predicated region
      $region45: #{dwconv_forward.1} parent=43 // pred_check
        %p422 = pneg %p421
      $region46: #{dwconv_forward.1} parent=43 // pred_check_branch
        %424 = sbr.rel (%p422) target = $region48
      $region47: #{dwconv_forward.1} parent=43 // pred_region
        %v425 = vld [vmem:[%s377] sm:$0xff]
        %v426 = vld [vmem:[%s377 + $0x8] sm:$0xff]
        %v427 = vld [vmem:[%s377 + $0x10] sm:$0x3]
        %v428 = vld [vmem:[%s377 + $0x18] sm:$0xff]
        %v429 = vld [vmem:[%s377 + $0x20] sm:$0xff]
        %v430 = vld [vmem:[%s377 + $0x28] sm:$0x3]
        %v431 = vld [vmem:[%s377 + $0x30] sm:$0xff]
        %v432 = vld [vmem:[%s377 + $0x38] sm:$0xff]
        %v433 = vld [vmem:[%s377 + $0x40] sm:$0x3]
        %v434 = vld [vmem:[%s377 + $0x48] sm:$0xff]
        %v435 = vld [vmem:[%s377 + $0x50] sm:$0xff]
        %v436 = vld [vmem:[%s377 + $0x58] sm:$0x3]
        %v437 = vld [vmem:[%s377 + $0x60] sm:$0xff]
        %v438 = vld [vmem:[%s377 + $0x68] sm:$0xff]
        %v439 = vld [vmem:[%s377 + $0x70] sm:$0x3]
        %v440 = vld [vmem:[%s377 + $0x78] sm:$0xff]
        %v441 = vld [vmem:[%s377 + $0x80] sm:$0xff]
        %v442 = vld [vmem:[%s377 + $0x88] sm:$0x3]
        %v443 = vld [vmem:[%s377 + $0x90] sm:$0xff]
        %v444 = vld [vmem:[%s377 + $0x98] sm:$0xff]
        %v445 = vld [vmem:[%s377 + $0xa0] sm:$0x3]
        %v446 = vld [vmem:[%s377 + $0xa8] sm:$0xff]
        %v447 = vld [vmem:[%s377 + $0xb0] sm:$0xff]
        %v448 = vld [vmem:[%s377 + $0xb8] sm:$0x3]
        %v449 = vld [vmem:[%s377 + $0xc0] sm:$0xff]
        %v450 = vld [vmem:[%s377 + $0xc8] sm:$0xff]
        %v451 = vld [vmem:[%s377 + $0xd0] sm:$0x3]
        %v452 = vld [vmem:[%s377 + $0xd8] sm:$0xff]
        %v453 = vld [vmem:[%s377 + $0xe0] sm:$0xff]
        %v454 = vld [vmem:[%s377 + $0xe8] sm:$0x3]
        %v455 = vld [vmem:[%s377 + $0xf0] sm:$0xff]
        %v456 = vld [vmem:[%s377 + $0xf8] sm:$0xff]
        %v457 = vld [vmem:[%s377 + $0x100] sm:$0x3]
        %v458 = vld [vmem:[%s377 + $0x108] sm:$0xff]
        %v459 = vld [vmem:[%s377 + $0x110] sm:$0xff]
        %v460 = vld [vmem:[%s377 + $0x118] sm:$0x3]
        %v461 = vld [vmem:[%s377 + $0x120] sm:$0xff]
        %v462 = vld [vmem:[%s377 + $0x128] sm:$0xff]
        %v463 = vld [vmem:[%s377 + $0x130] sm:$0x3]
        %v464 = vld [vmem:[%s377 + $0x138] sm:$0xff]
        %v465 = vld [vmem:[%s377 + $0x140] sm:$0xff]
        %v466 = vld [vmem:[%s377 + $0x148] sm:$0x3]
        %v467 = vld [vmem:[%s377 + $0x150] sm:$0xff]
        %v468 = vld [vmem:[%s377 + $0x158] sm:$0xff]
        %v469 = vld [vmem:[%s377 + $0x160] sm:$0x3]
        %v470 = vld [vmem:[%s377 + $0x168] sm:$0xff]
        %v471 = vld [vmem:[%s377 + $0x170] sm:$0xff]
        %v472 = vld [vmem:[%s377 + $0x178] sm:$0x3]
        %v473 = vld [vmem:[%s395] sm:$0xff]
        %v474 = vld [vmem:[%s395 + $0x8] sm:$0xff]
        %v475 = vld [vmem:[%s395 + $0x10] sm:$0x3]
        %v476 = vld [vmem:[%s395 + $0x18] sm:$0xff]
        %v477 = vld [vmem:[%s395 + $0x20] sm:$0xff]
        %v478 = vld [vmem:[%s395 + $0x28] sm:$0x3]
        %v479 = vld [vmem:[%s2] sm:$0xff]
        %v480 = vld [vmem:[%s2 + $0x8] sm:$0x1]
        %v481 = vperm.slane %v479, 0
        %v482 = vmul.f32 %v425, %v481
        %v483 = vmul.f32 %v426, %v481
        %v484 = vmul.f32 %v428, %v481
        %v485 = vmul.f32 %v429, %v481
        %v486 = vmul.f32 %v431, %v481
        %v487 = vmul.f32 %v432, %v481
        %v488 = vmul.f32 %v434, %v481
        %v489 = vmul.f32 %v435, %v481
        %v490 = vmul.f32 %v437, %v481
        %v491 = vmul.f32 %v438, %v481
        %v492 = vmul.f32 %v440, %v481
        %v493 = vmul.f32 %v441, %v481
        %v494 = vmul.f32 %v443, %v481
        %v495 = vmul.f32 %v444, %v481
        %v496 = vmul.f32 %v446, %v481
        %v497 = vmul.f32 %v447, %v481
        %v498 = vmul.f32 %v449, %v481
        %v499 = vmul.f32 %v450, %v481
        %v500 = vmul.f32 %v452, %v481
        %v501 = vmul.f32 %v453, %v481
        %v502 = vmul.f32 %v455, %v481
        %v503 = vmul.f32 %v456, %v481
        %v504 = vmul.f32 %v458, %v481
        %v505 = vmul.f32 %v459, %v481
        %v506 = vmul.f32 %v461, %v481
        %v507 = vmul.f32 %v462, %v481
        %v508 = vmul.f32 %v464, %v481
        %v509 = vmul.f32 %v465, %v481
        %v510 = vmul.f32 %v467, %v481
        %v511 = vmul.f32 %v468, %v481
        %v512 = vmul.f32 %v470, %v481
        %v513 = vmul.f32 %v471, %v481
        %v514 = vadd.f32 %v482, 0.0
        %v515 = vadd.f32 %v483, 0.0
        %v516 = vadd.f32 %v484, 0.0
        %v517 = vadd.f32 %v485, 0.0
        %v518 = vadd.f32 %v486, 0.0
        %v519 = vadd.f32 %v487, 0.0
        %v520 = vadd.f32 %v488, 0.0
        %v521 = vadd.f32 %v489, 0.0
        %v522 = vadd.f32 %v490, 0.0
        %v523 = vadd.f32 %v491, 0.0
        %v524 = vadd.f32 %v492, 0.0
        %v525 = vadd.f32 %v493, 0.0
        %v526 = vadd.f32 %v494, 0.0
        %v527 = vadd.f32 %v495, 0.0
        %v528 = vadd.f32 %v496, 0.0
        %v529 = vadd.f32 %v497, 0.0
        %v530 = vadd.f32 %v498, 0.0
        %v531 = vadd.f32 %v499, 0.0
        %v532 = vadd.f32 %v500, 0.0
        %v533 = vadd.f32 %v501, 0.0
        %v534 = vadd.f32 %v502, 0.0
        %v535 = vadd.f32 %v503, 0.0
        %v536 = vadd.f32 %v504, 0.0
        %v537 = vadd.f32 %v505, 0.0
        %v538 = vadd.f32 %v506, 0.0
        %v539 = vadd.f32 %v507, 0.0
        %v540 = vadd.f32 %v508, 0.0
        %v541 = vadd.f32 %v509, 0.0
        %v542 = vadd.f32 %v510, 0.0
        %v543 = vadd.f32 %v511, 0.0
        %v544 = vadd.f32 %v512, 0.0
        %v545 = vadd.f32 %v513, 0.0
        %v546 = vperm.slane %v479, 1
        %v547 = vmul.f32 %v425, %v546
        %v548 = vmul.f32 %v426, %v546
        %v549 = vmul.f32 %v427, %v546
        %v550 = vmul.f32 %v428, %v546
        %v551 = vmul.f32 %v429, %v546
        %v552 = vmul.f32 %v430, %v546
        %v553 = vmul.f32 %v431, %v546
        %v554 = vmul.f32 %v432, %v546
        %v555 = vmul.f32 %v433, %v546
        %v556 = vmul.f32 %v434, %v546
        %v557 = vmul.f32 %v435, %v546
        %v558 = vmul.f32 %v436, %v546
        %v559 = vmul.f32 %v437, %v546
        %v560 = vmul.f32 %v438, %v546
        %v561 = vmul.f32 %v439, %v546
        %v562 = vmul.f32 %v440, %v546
        %v563 = vmul.f32 %v441, %v546
        %v564 = vmul.f32 %v442, %v546
        %v565 = vmul.f32 %v443, %v546
        %v566 = vmul.f32 %v444, %v546
        %v567 = vmul.f32 %v445, %v546
        %v568 = vmul.f32 %v446, %v546
        %v569 = vmul.f32 %v447, %v546
        %v570 = vmul.f32 %v448, %v546
        %v571 = vmul.f32 %v449, %v546
        %v572 = vmul.f32 %v450, %v546
        %v573 = vmul.f32 %v451, %v546
        %v574 = vmul.f32 %v452, %v546
        %v575 = vmul.f32 %v453, %v546
        %v576 = vmul.f32 %v454, %v546
        %v577 = vmul.f32 %v455, %v546
        %v578 = vmul.f32 %v456, %v546
        %v579 = vmul.f32 %v457, %v546
        %v580 = vmul.f32 %v458, %v546
        %v581 = vmul.f32 %v459, %v546
        %v582 = vmul.f32 %v460, %v546
        %v583 = vmul.f32 %v461, %v546
        %v584 = vmul.f32 %v462, %v546
        %v585 = vmul.f32 %v463, %v546
        %v586 = vmul.f32 %v464, %v546
        %v587 = vmul.f32 %v465, %v546
        %v588 = vmul.f32 %v466, %v546
        %v589 = vmul.f32 %v467, %v546
        %v590 = vmul.f32 %v468, %v546
        %v591 = vmul.f32 %v469, %v546
        %v592 = vmul.f32 %v470, %v546
        %v593 = vmul.f32 %v471, %v546
        %v594 = vmul.f32 %v472, %v546
        %vm643 = vcmask 1046528
        %v644 = vrot.slane %v547, 1
        %v645 = vrot.slane %v548, 1
        %v646 = vsel %vm643, %v644, %v645
        %v647 = vrot.slane %v549, 1
        %v648 = vsel %vm643, %v645, %v647
        %v649 = vrot.slane %v550, 1
        %v650 = vrot.slane %v551, 1
        %v651 = vsel %vm643, %v649, %v650
        %v652 = vrot.slane %v552, 1
        %v653 = vsel %vm643, %v650, %v652
        %v654 = vrot.slane %v553, 1
        %v655 = vrot.slane %v554, 1
        %v656 = vsel %vm643, %v654, %v655
        %v657 = vrot.slane %v555, 1
        %v658 = vsel %vm643, %v655, %v657
        %v659 = vrot.slane %v556, 1
        %v660 = vrot.slane %v557, 1
        %v661 = vsel %vm643, %v659, %v660
        %v662 = vrot.slane %v558, 1
        %v663 = vsel %vm643, %v660, %v662
        %v664 = vrot.slane %v559, 1
        %v665 = vrot.slane %v560, 1
        %v666 = vsel %vm643, %v664, %v665
        %v667 = vrot.slane %v561, 1
        %v668 = vsel %vm643, %v665, %v667
        %v669 = vrot.slane %v562, 1
        %v670 = vrot.slane %v563, 1
        %v671 = vsel %vm643, %v669, %v670
        %v672 = vrot.slane %v564, 1
        %v673 = vsel %vm643, %v670, %v672
        %v674 = vrot.slane %v565, 1
        %v675 = vrot.slane %v566, 1
        %v676 = vsel %vm643, %v674, %v675
        %v677 = vrot.slane %v567, 1
        %v678 = vsel %vm643, %v675, %v677
        %v679 = vrot.slane %v568, 1
        %v680 = vrot.slane %v569, 1
        %v681 = vsel %vm643, %v679, %v680
        %v682 = vrot.slane %v570, 1
        %v683 = vsel %vm643, %v680, %v682
        %v684 = vrot.slane %v571, 1
        %v685 = vrot.slane %v572, 1
        %v686 = vsel %vm643, %v684, %v685
        %v687 = vrot.slane %v573, 1
        %v688 = vsel %vm643, %v685, %v687
        %v689 = vrot.slane %v574, 1
        %v690 = vrot.slane %v575, 1
        %v691 = vsel %vm643, %v689, %v690
        %v692 = vrot.slane %v576, 1
        %v693 = vsel %vm643, %v690, %v692
        %v694 = vrot.slane %v577, 1
        %v695 = vrot.slane %v578, 1
        %v696 = vsel %vm643, %v694, %v695
        %v697 = vrot.slane %v579, 1
        %v698 = vsel %vm643, %v695, %v697
        %v699 = vrot.slane %v580, 1
        %v700 = vrot.slane %v581, 1
        %v701 = vsel %vm643, %v699, %v700
        %v702 = vrot.slane %v582, 1
        %v703 = vsel %vm643, %v700, %v702
        %v704 = vrot.slane %v583, 1
        %v705 = vrot.slane %v584, 1
        %v706 = vsel %vm643, %v704, %v705
        %v707 = vrot.slane %v585, 1
        %v708 = vsel %vm643, %v705, %v707
        %v709 = vrot.slane %v586, 1
        %v710 = vrot.slane %v587, 1
        %v711 = vsel %vm643, %v709, %v710
        %v712 = vrot.slane %v588, 1
        %v713 = vsel %vm643, %v710, %v712
        %v714 = vrot.slane %v589, 1
        %v715 = vrot.slane %v590, 1
        %v716 = vsel %vm643, %v714, %v715
        %v717 = vrot.slane %v591, 1
        %v718 = vsel %vm643, %v715, %v717
        %v719 = vrot.slane %v592, 1
        %v720 = vrot.slane %v593, 1
        %v721 = vsel %vm643, %v719, %v720
        %v722 = vrot.slane %v594, 1
        %v723 = vsel %vm643, %v720, %v722
        %v756 = vadd.f32 %v514, %v646
        %v757 = vadd.f32 %v515, %v648
        %v758 = vadd.f32 %v516, %v651
        %v759 = vadd.f32 %v517, %v653
        %v760 = vadd.f32 %v518, %v656
        %v761 = vadd.f32 %v519, %v658
        %v762 = vadd.f32 %v520, %v661
        %v763 = vadd.f32 %v521, %v663
        %v764 = vadd.f32 %v522, %v666
        %v765 = vadd.f32 %v523, %v668
        %v766 = vadd.f32 %v524, %v671
        %v767 = vadd.f32 %v525, %v673
        %v768 = vadd.f32 %v526, %v676
        %v769 = vadd.f32 %v527, %v678
        %v770 = vadd.f32 %v528, %v681
        %v771 = vadd.f32 %v529, %v683
        %v772 = vadd.f32 %v530, %v686
        %v773 = vadd.f32 %v531, %v688
        %v774 = vadd.f32 %v532, %v691
        %v775 = vadd.f32 %v533, %v693
        %v776 = vadd.f32 %v534, %v696
        %v777 = vadd.f32 %v535, %v698
        %v778 = vadd.f32 %v536, %v701
        %v779 = vadd.f32 %v537, %v703
        %v780 = vadd.f32 %v538, %v706
        %v781 = vadd.f32 %v539, %v708
        %v782 = vadd.f32 %v540, %v711
        %v783 = vadd.f32 %v541, %v713
        %v784 = vadd.f32 %v542, %v716
        %v785 = vadd.f32 %v543, %v718
        %v786 = vadd.f32 %v544, %v721
        %v787 = vadd.f32 %v545, %v723
        %v788 = vperm.slane %v479, 2
        %v789 = vmul.f32 %v425, %v788
        %v790 = vmul.f32 %v426, %v788
        %v791 = vmul.f32 %v427, %v788
        %v792 = vmul.f32 %v428, %v788
        %v793 = vmul.f32 %v429, %v788
        %v794 = vmul.f32 %v430, %v788
        %v795 = vmul.f32 %v431, %v788
        %v796 = vmul.f32 %v432, %v788
        %v797 = vmul.f32 %v433, %v788
        %v798 = vmul.f32 %v434, %v788
        %v799 = vmul.f32 %v435, %v788
        %v800 = vmul.f32 %v436, %v788
        %v801 = vmul.f32 %v437, %v788
        %v802 = vmul.f32 %v438, %v788
        %v803 = vmul.f32 %v439, %v788
        %v804 = vmul.f32 %v440, %v788
        %v805 = vmul.f32 %v441, %v788
        %v806 = vmul.f32 %v442, %v788
        %v807 = vmul.f32 %v443, %v788
        %v808 = vmul.f32 %v444, %v788
        %v809 = vmul.f32 %v445, %v788
        %v810 = vmul.f32 %v446, %v788
        %v811 = vmul.f32 %v447, %v788
        %v812 = vmul.f32 %v448, %v788
        %v813 = vmul.f32 %v449, %v788
        %v814 = vmul.f32 %v450, %v788
        %v815 = vmul.f32 %v451, %v788
        %v816 = vmul.f32 %v452, %v788
        %v817 = vmul.f32 %v453, %v788
        %v818 = vmul.f32 %v454, %v788
        %v819 = vmul.f32 %v455, %v788
        %v820 = vmul.f32 %v456, %v788
        %v821 = vmul.f32 %v457, %v788
        %v822 = vmul.f32 %v458, %v788
        %v823 = vmul.f32 %v459, %v788
        %v824 = vmul.f32 %v460, %v788
        %v825 = vmul.f32 %v461, %v788
        %v826 = vmul.f32 %v462, %v788
        %v827 = vmul.f32 %v463, %v788
        %v828 = vmul.f32 %v464, %v788
        %v829 = vmul.f32 %v465, %v788
        %v830 = vmul.f32 %v466, %v788
        %v831 = vmul.f32 %v467, %v788
        %v832 = vmul.f32 %v468, %v788
        %v833 = vmul.f32 %v469, %v788
        %v834 = vmul.f32 %v470, %v788
        %v835 = vmul.f32 %v471, %v788
        %v836 = vmul.f32 %v472, %v788
        %vm885 = vcmask 1045504
        %v886 = vrot.slane %v789, 2
        %v887 = vrot.slane %v790, 2
        %v888 = vsel %vm885, %v886, %v887
        %v889 = vrot.slane %v791, 2
        %v890 = vsel %vm885, %v887, %v889
        %v891 = vrot.slane %v792, 2
        %v892 = vrot.slane %v793, 2
        %v893 = vsel %vm885, %v891, %v892
        %v894 = vrot.slane %v794, 2
        %v895 = vsel %vm885, %v892, %v894
        %v896 = vrot.slane %v795, 2
        %v897 = vrot.slane %v796, 2
        %v898 = vsel %vm885, %v896, %v897
        %v899 = vrot.slane %v797, 2
        %v900 = vsel %vm885, %v897, %v899
        %v901 = vrot.slane %v798, 2
        %v902 = vrot.slane %v799, 2
        %v903 = vsel %vm885, %v901, %v902
        %v904 = vrot.slane %v800, 2
        %v905 = vsel %vm885, %v902, %v904
        %v906 = vrot.slane %v801, 2
        %v907 = vrot.slane %v802, 2
        %v908 = vsel %vm885, %v906, %v907
        %v909 = vrot.slane %v803, 2
        %v910 = vsel %vm885, %v907, %v909
        %v911 = vrot.slane %v804, 2
        %v912 = vrot.slane %v805, 2
        %v913 = vsel %vm885, %v911, %v912
        %v914 = vrot.slane %v806, 2
        %v915 = vsel %vm885, %v912, %v914
        %v916 = vrot.slane %v807, 2
        %v917 = vrot.slane %v808, 2
        %v918 = vsel %vm885, %v916, %v917
        %v919 = vrot.slane %v809, 2
        %v920 = vsel %vm885, %v917, %v919
        %v921 = vrot.slane %v810, 2
        %v922 = vrot.slane %v811, 2
        %v923 = vsel %vm885, %v921, %v922
        %v924 = vrot.slane %v812, 2
        %v925 = vsel %vm885, %v922, %v924
        %v926 = vrot.slane %v813, 2
        %v927 = vrot.slane %v814, 2
        %v928 = vsel %vm885, %v926, %v927
        %v929 = vrot.slane %v815, 2
        %v930 = vsel %vm885, %v927, %v929
        %v931 = vrot.slane %v816, 2
        %v932 = vrot.slane %v817, 2
        %v933 = vsel %vm885, %v931, %v932
        %v934 = vrot.slane %v818, 2
        %v935 = vsel %vm885, %v932, %v934
        %v936 = vrot.slane %v819, 2
        %v937 = vrot.slane %v820, 2
        %v938 = vsel %vm885, %v936, %v937
        %v939 = vrot.slane %v821, 2
        %v940 = vsel %vm885, %v937, %v939
        %v941 = vrot.slane %v822, 2
        %v942 = vrot.slane %v823, 2
        %v943 = vsel %vm885, %v941, %v942
        %v944 = vrot.slane %v824, 2
        %v945 = vsel %vm885, %v942, %v944
        %v946 = vrot.slane %v825, 2
        %v947 = vrot.slane %v826, 2
        %v948 = vsel %vm885, %v946, %v947
        %v949 = vrot.slane %v827, 2
        %v950 = vsel %vm885, %v947, %v949
        %v951 = vrot.slane %v828, 2
        %v952 = vrot.slane %v829, 2
        %v953 = vsel %vm885, %v951, %v952
        %v954 = vrot.slane %v830, 2
        %v955 = vsel %vm885, %v952, %v954
        %v956 = vrot.slane %v831, 2
        %v957 = vrot.slane %v832, 2
        %v958 = vsel %vm885, %v956, %v957
        %v959 = vrot.slane %v833, 2
        %v960 = vsel %vm885, %v957, %v959
        %v961 = vrot.slane %v834, 2
        %v962 = vrot.slane %v835, 2
        %v963 = vsel %vm885, %v961, %v962
        %v964 = vrot.slane %v836, 2
        %v965 = vsel %vm885, %v962, %v964
        %v998 = vadd.f32 %v756, %v888
        %v999 = vadd.f32 %v757, %v890
        %v1000 = vadd.f32 %v758, %v893
        %v1001 = vadd.f32 %v759, %v895
        %v1002 = vadd.f32 %v760, %v898
        %v1003 = vadd.f32 %v761, %v900
        %v1004 = vadd.f32 %v762, %v903
        %v1005 = vadd.f32 %v763, %v905
        %v1006 = vadd.f32 %v764, %v908
        %v1007 = vadd.f32 %v765, %v910
        %v1008 = vadd.f32 %v766, %v913
        %v1009 = vadd.f32 %v767, %v915
        %v1010 = vadd.f32 %v768, %v918
        %v1011 = vadd.f32 %v769, %v920
        %v1012 = vadd.f32 %v770, %v923
        %v1013 = vadd.f32 %v771, %v925
        %v1014 = vadd.f32 %v772, %v928
        %v1015 = vadd.f32 %v773, %v930
        %v1016 = vadd.f32 %v774, %v933
        %v1017 = vadd.f32 %v775, %v935
        %v1018 = vadd.f32 %v776, %v938
        %v1019 = vadd.f32 %v777, %v940
        %v1020 = vadd.f32 %v778, %v943
        %v1021 = vadd.f32 %v779, %v945
        %v1022 = vadd.f32 %v780, %v948
        %v1023 = vadd.f32 %v781, %v950
        %v1024 = vadd.f32 %v782, %v953
        %v1025 = vadd.f32 %v783, %v955
        %v1026 = vadd.f32 %v784, %v958
        %v1027 = vadd.f32 %v785, %v960
        %v1028 = vadd.f32 %v786, %v963
        %v1029 = vadd.f32 %v787, %v965
        %v1030 = vperm.slane %v479, 3
        %v1031 = vmul.f32 %v428, %v1030
        %v1032 = vmul.f32 %v429, %v1030
        %v1033 = vmul.f32 %v431, %v1030
        %v1034 = vmul.f32 %v432, %v1030
        %v1035 = vmul.f32 %v434, %v1030
        %v1036 = vmul.f32 %v435, %v1030
        %v1037 = vmul.f32 %v437, %v1030
        %v1038 = vmul.f32 %v438, %v1030
        %v1039 = vmul.f32 %v440, %v1030
        %v1040 = vmul.f32 %v441, %v1030
        %v1041 = vmul.f32 %v443, %v1030
        %v1042 = vmul.f32 %v444, %v1030
        %v1043 = vmul.f32 %v446, %v1030
        %v1044 = vmul.f32 %v447, %v1030
        %v1045 = vmul.f32 %v449, %v1030
        %v1046 = vmul.f32 %v450, %v1030
        %v1047 = vmul.f32 %v452, %v1030
        %v1048 = vmul.f32 %v453, %v1030
        %v1049 = vmul.f32 %v455, %v1030
        %v1050 = vmul.f32 %v456, %v1030
        %v1051 = vmul.f32 %v458, %v1030
        %v1052 = vmul.f32 %v459, %v1030
        %v1053 = vmul.f32 %v461, %v1030
        %v1054 = vmul.f32 %v462, %v1030
        %v1055 = vmul.f32 %v464, %v1030
        %v1056 = vmul.f32 %v465, %v1030
        %v1057 = vmul.f32 %v467, %v1030
        %v1058 = vmul.f32 %v468, %v1030
        %v1059 = vmul.f32 %v470, %v1030
        %v1060 = vmul.f32 %v471, %v1030
        %v1061 = vmul.f32 %v473, %v1030
        %v1062 = vmul.f32 %v474, %v1030
        %v1063 = vadd.f32 %v998, %v1031
        %v1064 = vadd.f32 %v999, %v1032
        %v1065 = vadd.f32 %v1000, %v1033
        %v1066 = vadd.f32 %v1001, %v1034
        %v1067 = vadd.f32 %v1002, %v1035
        %v1068 = vadd.f32 %v1003, %v1036
        %v1069 = vadd.f32 %v1004, %v1037
        %v1070 = vadd.f32 %v1005, %v1038
        %v1071 = vadd.f32 %v1006, %v1039
        %v1072 = vadd.f32 %v1007, %v1040
        %v1073 = vadd.f32 %v1008, %v1041
        %v1074 = vadd.f32 %v1009, %v1042
        %v1075 = vadd.f32 %v1010, %v1043
        %v1076 = vadd.f32 %v1011, %v1044
        %v1077 = vadd.f32 %v1012, %v1045
        %v1078 = vadd.f32 %v1013, %v1046
        %v1079 = vadd.f32 %v1014, %v1047
        %v1080 = vadd.f32 %v1015, %v1048
        %v1081 = vadd.f32 %v1016, %v1049
        %v1082 = vadd.f32 %v1017, %v1050
        %v1083 = vadd.f32 %v1018, %v1051
        %v1084 = vadd.f32 %v1019, %v1052
        %v1085 = vadd.f32 %v1020, %v1053
        %v1086 = vadd.f32 %v1021, %v1054
        %v1087 = vadd.f32 %v1022, %v1055
        %v1088 = vadd.f32 %v1023, %v1056
        %v1089 = vadd.f32 %v1024, %v1057
        %v1090 = vadd.f32 %v1025, %v1058
        %v1091 = vadd.f32 %v1026, %v1059
        %v1092 = vadd.f32 %v1027, %v1060
        %v1093 = vadd.f32 %v1028, %v1061
        %v1094 = vadd.f32 %v1029, %v1062
        %v1095 = vperm.slane %v479, 4
        %v1096 = vmul.f32 %v428, %v1095
        %v1097 = vmul.f32 %v429, %v1095
        %v1098 = vmul.f32 %v430, %v1095
        %v1099 = vmul.f32 %v431, %v1095
        %v1100 = vmul.f32 %v432, %v1095
        %v1101 = vmul.f32 %v433, %v1095
        %v1102 = vmul.f32 %v434, %v1095
        %v1103 = vmul.f32 %v435, %v1095
        %v1104 = vmul.f32 %v436, %v1095
        %v1105 = vmul.f32 %v437, %v1095
        %v1106 = vmul.f32 %v438, %v1095
        %v1107 = vmul.f32 %v439, %v1095
        %v1108 = vmul.f32 %v440, %v1095
        %v1109 = vmul.f32 %v441, %v1095
        %v1110 = vmul.f32 %v442, %v1095
        %v1111 = vmul.f32 %v443, %v1095
        %v1112 = vmul.f32 %v444, %v1095
        %v1113 = vmul.f32 %v445, %v1095
        %v1114 = vmul.f32 %v446, %v1095
        %v1115 = vmul.f32 %v447, %v1095
        %v1116 = vmul.f32 %v448, %v1095
        %v1117 = vmul.f32 %v449, %v1095
        %v1118 = vmul.f32 %v450, %v1095
        %v1119 = vmul.f32 %v451, %v1095
        %v1120 = vmul.f32 %v452, %v1095
        %v1121 = vmul.f32 %v453, %v1095
        %v1122 = vmul.f32 %v454, %v1095
        %v1123 = vmul.f32 %v455, %v1095
        %v1124 = vmul.f32 %v456, %v1095
        %v1125 = vmul.f32 %v457, %v1095
        %v1126 = vmul.f32 %v458, %v1095
        %v1127 = vmul.f32 %v459, %v1095
        %v1128 = vmul.f32 %v460, %v1095
        %v1129 = vmul.f32 %v461, %v1095
        %v1130 = vmul.f32 %v462, %v1095
        %v1131 = vmul.f32 %v463, %v1095
        %v1132 = vmul.f32 %v464, %v1095
        %v1133 = vmul.f32 %v465, %v1095
        %v1134 = vmul.f32 %v466, %v1095
        %v1135 = vmul.f32 %v467, %v1095
        %v1136 = vmul.f32 %v468, %v1095
        %v1137 = vmul.f32 %v469, %v1095
        %v1138 = vmul.f32 %v470, %v1095
        %v1139 = vmul.f32 %v471, %v1095
        %v1140 = vmul.f32 %v472, %v1095
        %v1141 = vmul.f32 %v473, %v1095
        %v1142 = vmul.f32 %v474, %v1095
        %v1143 = vmul.f32 %v475, %v1095
        %v1192 = vrot.slane %v1096, 1
        %v1193 = vrot.slane %v1097, 1
        %v1194 = vsel %vm643, %v1192, %v1193
        %v1195 = vrot.slane %v1098, 1
        %v1196 = vsel %vm643, %v1193, %v1195
        %v1197 = vrot.slane %v1099, 1
        %v1198 = vrot.slane %v1100, 1
        %v1199 = vsel %vm643, %v1197, %v1198
        %v1200 = vrot.slane %v1101, 1
        %v1201 = vsel %vm643, %v1198, %v1200
        %v1202 = vrot.slane %v1102, 1
        %v1203 = vrot.slane %v1103, 1
        %v1204 = vsel %vm643, %v1202, %v1203
        %v1205 = vrot.slane %v1104, 1
        %v1206 = vsel %vm643, %v1203, %v1205
        %v1207 = vrot.slane %v1105, 1
        %v1208 = vrot.slane %v1106, 1
        %v1209 = vsel %vm643, %v1207, %v1208
        %v1210 = vrot.slane %v1107, 1
        %v1211 = vsel %vm643, %v1208, %v1210
        %v1212 = vrot.slane %v1108, 1
        %v1213 = vrot.slane %v1109, 1
        %v1214 = vsel %vm643, %v1212, %v1213
        %v1215 = vrot.slane %v1110, 1
        %v1216 = vsel %vm643, %v1213, %v1215
        %v1217 = vrot.slane %v1111, 1
        %v1218 = vrot.slane %v1112, 1
        %v1219 = vsel %vm643, %v1217, %v1218
        %v1220 = vrot.slane %v1113, 1
        %v1221 = vsel %vm643, %v1218, %v1220
        %v1222 = vrot.slane %v1114, 1
        %v1223 = vrot.slane %v1115, 1
        %v1224 = vsel %vm643, %v1222, %v1223
        %v1225 = vrot.slane %v1116, 1
        %v1226 = vsel %vm643, %v1223, %v1225
        %v1227 = vrot.slane %v1117, 1
        %v1228 = vrot.slane %v1118, 1
        %v1229 = vsel %vm643, %v1227, %v1228
        %v1230 = vrot.slane %v1119, 1
        %v1231 = vsel %vm643, %v1228, %v1230
        %v1232 = vrot.slane %v1120, 1
        %v1233 = vrot.slane %v1121, 1
        %v1234 = vsel %vm643, %v1232, %v1233
        %v1235 = vrot.slane %v1122, 1
        %v1236 = vsel %vm643, %v1233, %v1235
        %v1237 = vrot.slane %v1123, 1
        %v1238 = vrot.slane %v1124, 1
        %v1239 = vsel %vm643, %v1237, %v1238
        %v1240 = vrot.slane %v1125, 1
        %v1241 = vsel %vm643, %v1238, %v1240
        %v1242 = vrot.slane %v1126, 1
        %v1243 = vrot.slane %v1127, 1
        %v1244 = vsel %vm643, %v1242, %v1243
        %v1245 = vrot.slane %v1128, 1
        %v1246 = vsel %vm643, %v1243, %v1245
        %v1247 = vrot.slane %v1129, 1
        %v1248 = vrot.slane %v1130, 1
        %v1249 = vsel %vm643, %v1247, %v1248
        %v1250 = vrot.slane %v1131, 1
        %v1251 = vsel %vm643, %v1248, %v1250
        %v1252 = vrot.slane %v1132, 1
        %v1253 = vrot.slane %v1133, 1
        %v1254 = vsel %vm643, %v1252, %v1253
        %v1255 = vrot.slane %v1134, 1
        %v1256 = vsel %vm643, %v1253, %v1255
        %v1257 = vrot.slane %v1135, 1
        %v1258 = vrot.slane %v1136, 1
        %v1259 = vsel %vm643, %v1257, %v1258
        %v1260 = vrot.slane %v1137, 1
        %v1261 = vsel %vm643, %v1258, %v1260
        %v1262 = vrot.slane %v1138, 1
        %v1263 = vrot.slane %v1139, 1
        %v1264 = vsel %vm643, %v1262, %v1263
        %v1265 = vrot.slane %v1140, 1
        %v1266 = vsel %vm643, %v1263, %v1265
        %v1267 = vrot.slane %v1141, 1
        %v1268 = vrot.slane %v1142, 1
        %v1269 = vsel %vm643, %v1267, %v1268
        %v1270 = vrot.slane %v1143, 1
        %v1271 = vsel %vm643, %v1268, %v1270
        %v1304 = vadd.f32 %v1063, %v1194
        %v1305 = vadd.f32 %v1064, %v1196
        %v1306 = vadd.f32 %v1065, %v1199
        %v1307 = vadd.f32 %v1066, %v1201
        %v1308 = vadd.f32 %v1067, %v1204
        %v1309 = vadd.f32 %v1068, %v1206
        %v1310 = vadd.f32 %v1069, %v1209
        %v1311 = vadd.f32 %v1070, %v1211
        %v1312 = vadd.f32 %v1071, %v1214
        %v1313 = vadd.f32 %v1072, %v1216
        %v1314 = vadd.f32 %v1073, %v1219
        %v1315 = vadd.f32 %v1074, %v1221
        %v1316 = vadd.f32 %v1075, %v1224
        %v1317 = vadd.f32 %v1076, %v1226
        %v1318 = vadd.f32 %v1077, %v1229
        %v1319 = vadd.f32 %v1078, %v1231
        %v1320 = vadd.f32 %v1079, %v1234
        %v1321 = vadd.f32 %v1080, %v1236
        %v1322 = vadd.f32 %v1081, %v1239
        %v1323 = vadd.f32 %v1082, %v1241
        %v1324 = vadd.f32 %v1083, %v1244
        %v1325 = vadd.f32 %v1084, %v1246
        %v1326 = vadd.f32 %v1085, %v1249
        %v1327 = vadd.f32 %v1086, %v1251
        %v1328 = vadd.f32 %v1087, %v1254
        %v1329 = vadd.f32 %v1088, %v1256
        %v1330 = vadd.f32 %v1089, %v1259
        %v1331 = vadd.f32 %v1090, %v1261
        %v1332 = vadd.f32 %v1091, %v1264
        %v1333 = vadd.f32 %v1092, %v1266
        %v1334 = vadd.f32 %v1093, %v1269
        %v1335 = vadd.f32 %v1094, %v1271
        %v1336 = vperm.slane %v479, 5
        %v1337 = vmul.f32 %v428, %v1336
        %v1338 = vmul.f32 %v429, %v1336
        %v1339 = vmul.f32 %v430, %v1336
        %v1340 = vmul.f32 %v431, %v1336
        %v1341 = vmul.f32 %v432, %v1336
        %v1342 = vmul.f32 %v433, %v1336
        %v1343 = vmul.f32 %v434, %v1336
        %v1344 = vmul.f32 %v435, %v1336
        %v1345 = vmul.f32 %v436, %v1336
        %v1346 = vmul.f32 %v437, %v1336
        %v1347 = vmul.f32 %v438, %v1336
        %v1348 = vmul.f32 %v439, %v1336
        %v1349 = vmul.f32 %v440, %v1336
        %v1350 = vmul.f32 %v441, %v1336
        %v1351 = vmul.f32 %v442, %v1336
        %v1352 = vmul.f32 %v443, %v1336
        %v1353 = vmul.f32 %v444, %v1336
        %v1354 = vmul.f32 %v445, %v1336
        %v1355 = vmul.f32 %v446, %v1336
        %v1356 = vmul.f32 %v447, %v1336
        %v1357 = vmul.f32 %v448, %v1336
        %v1358 = vmul.f32 %v449, %v1336
        %v1359 = vmul.f32 %v450, %v1336
        %v1360 = vmul.f32 %v451, %v1336
        %v1361 = vmul.f32 %v452, %v1336
        %v1362 = vmul.f32 %v453, %v1336
        %v1363 = vmul.f32 %v454, %v1336
        %v1364 = vmul.f32 %v455, %v1336
        %v1365 = vmul.f32 %v456, %v1336
        %v1366 = vmul.f32 %v457, %v1336
        %v1367 = vmul.f32 %v458, %v1336
        %v1368 = vmul.f32 %v459, %v1336
        %v1369 = vmul.f32 %v460, %v1336
        %v1370 = vmul.f32 %v461, %v1336
        %v1371 = vmul.f32 %v462, %v1336
        %v1372 = vmul.f32 %v463, %v1336
        %v1373 = vmul.f32 %v464, %v1336
        %v1374 = vmul.f32 %v465, %v1336
        %v1375 = vmul.f32 %v466, %v1336
        %v1376 = vmul.f32 %v467, %v1336
        %v1377 = vmul.f32 %v468, %v1336
        %v1378 = vmul.f32 %v469, %v1336
        %v1379 = vmul.f32 %v470, %v1336
        %v1380 = vmul.f32 %v471, %v1336
        %v1381 = vmul.f32 %v472, %v1336
        %v1382 = vmul.f32 %v473, %v1336
        %v1383 = vmul.f32 %v474, %v1336
        %v1384 = vmul.f32 %v475, %v1336
        %v1433 = vrot.slane %v1337, 2
        %v1434 = vrot.slane %v1338, 2
        %v1435 = vsel %vm885, %v1433, %v1434
        %v1436 = vrot.slane %v1339, 2
        %v1437 = vsel %vm885, %v1434, %v1436
        %v1438 = vrot.slane %v1340, 2
        %v1439 = vrot.slane %v1341, 2
        %v1440 = vsel %vm885, %v1438, %v1439
        %v1441 = vrot.slane %v1342, 2
        %v1442 = vsel %vm885, %v1439, %v1441
        %v1443 = vrot.slane %v1343, 2
        %v1444 = vrot.slane %v1344, 2
        %v1445 = vsel %vm885, %v1443, %v1444
        %v1446 = vrot.slane %v1345, 2
        %v1447 = vsel %vm885, %v1444, %v1446
        %v1448 = vrot.slane %v1346, 2
        %v1449 = vrot.slane %v1347, 2
        %v1450 = vsel %vm885, %v1448, %v1449
        %v1451 = vrot.slane %v1348, 2
        %v1452 = vsel %vm885, %v1449, %v1451
        %v1453 = vrot.slane %v1349, 2
        %v1454 = vrot.slane %v1350, 2
        %v1455 = vsel %vm885, %v1453, %v1454
        %v1456 = vrot.slane %v1351, 2
        %v1457 = vsel %vm885, %v1454, %v1456
        %v1458 = vrot.slane %v1352, 2
        %v1459 = vrot.slane %v1353, 2
        %v1460 = vsel %vm885, %v1458, %v1459
        %v1461 = vrot.slane %v1354, 2
        %v1462 = vsel %vm885, %v1459, %v1461
        %v1463 = vrot.slane %v1355, 2
        %v1464 = vrot.slane %v1356, 2
        %v1465 = vsel %vm885, %v1463, %v1464
        %v1466 = vrot.slane %v1357, 2
        %v1467 = vsel %vm885, %v1464, %v1466
        %v1468 = vrot.slane %v1358, 2
        %v1469 = vrot.slane %v1359, 2
        %v1470 = vsel %vm885, %v1468, %v1469
        %v1471 = vrot.slane %v1360, 2
        %v1472 = vsel %vm885, %v1469, %v1471
        %v1473 = vrot.slane %v1361, 2
        %v1474 = vrot.slane %v1362, 2
        %v1475 = vsel %vm885, %v1473, %v1474
        %v1476 = vrot.slane %v1363, 2
        %v1477 = vsel %vm885, %v1474, %v1476
        %v1478 = vrot.slane %v1364, 2
        %v1479 = vrot.slane %v1365, 2
        %v1480 = vsel %vm885, %v1478, %v1479
        %v1481 = vrot.slane %v1366, 2
        %v1482 = vsel %vm885, %v1479, %v1481
        %v1483 = vrot.slane %v1367, 2
        %v1484 = vrot.slane %v1368, 2
        %v1485 = vsel %vm885, %v1483, %v1484
        %v1486 = vrot.slane %v1369, 2
        %v1487 = vsel %vm885, %v1484, %v1486
        %v1488 = vrot.slane %v1370, 2
        %v1489 = vrot.slane %v1371, 2
        %v1490 = vsel %vm885, %v1488, %v1489
        %v1491 = vrot.slane %v1372, 2
        %v1492 = vsel %vm885, %v1489, %v1491
        %v1493 = vrot.slane %v1373, 2
        %v1494 = vrot.slane %v1374, 2
        %v1495 = vsel %vm885, %v1493, %v1494
        %v1496 = vrot.slane %v1375, 2
        %v1497 = vsel %vm885, %v1494, %v1496
        %v1498 = vrot.slane %v1376, 2
        %v1499 = vrot.slane %v1377, 2
        %v1500 = vsel %vm885, %v1498, %v1499
        %v1501 = vrot.slane %v1378, 2
        %v1502 = vsel %vm885, %v1499, %v1501
        %v1503 = vrot.slane %v1379, 2
        %v1504 = vrot.slane %v1380, 2
        %v1505 = vsel %vm885, %v1503, %v1504
        %v1506 = vrot.slane %v1381, 2
        %v1507 = vsel %vm885, %v1504, %v1506
        %v1508 = vrot.slane %v1382, 2
        %v1509 = vrot.slane %v1383, 2
        %v1510 = vsel %vm885, %v1508, %v1509
        %v1511 = vrot.slane %v1384, 2
        %v1512 = vsel %vm885, %v1509, %v1511
        %v1545 = vadd.f32 %v1304, %v1435
        %v1546 = vadd.f32 %v1305, %v1437
        %v1547 = vadd.f32 %v1306, %v1440
        %v1548 = vadd.f32 %v1307, %v1442
        %v1549 = vadd.f32 %v1308, %v1445
        %v1550 = vadd.f32 %v1309, %v1447
        %v1551 = vadd.f32 %v1310, %v1450
        %v1552 = vadd.f32 %v1311, %v1452
        %v1553 = vadd.f32 %v1312, %v1455
        %v1554 = vadd.f32 %v1313, %v1457
        %v1555 = vadd.f32 %v1314, %v1460
        %v1556 = vadd.f32 %v1315, %v1462
        %v1557 = vadd.f32 %v1316, %v1465
        %v1558 = vadd.f32 %v1317, %v1467
        %v1559 = vadd.f32 %v1318, %v1470
        %v1560 = vadd.f32 %v1319, %v1472
        %v1561 = vadd.f32 %v1320, %v1475
        %v1562 = vadd.f32 %v1321, %v1477
        %v1563 = vadd.f32 %v1322, %v1480
        %v1564 = vadd.f32 %v1323, %v1482
        %v1565 = vadd.f32 %v1324, %v1485
        %v1566 = vadd.f32 %v1325, %v1487
        %v1567 = vadd.f32 %v1326, %v1490
        %v1568 = vadd.f32 %v1327, %v1492
        %v1569 = vadd.f32 %v1328, %v1495
        %v1570 = vadd.f32 %v1329, %v1497
        %v1571 = vadd.f32 %v1330, %v1500
        %v1572 = vadd.f32 %v1331, %v1502
        %v1573 = vadd.f32 %v1332, %v1505
        %v1574 = vadd.f32 %v1333, %v1507
        %v1575 = vadd.f32 %v1334, %v1510
        %v1576 = vadd.f32 %v1335, %v1512
        %v1577 = vperm.slane %v479, 6
        %v1578 = vmul.f32 %v431, %v1577
        %v1579 = vmul.f32 %v432, %v1577
        %v1580 = vmul.f32 %v434, %v1577
        %v1581 = vmul.f32 %v435, %v1577
        %v1582 = vmul.f32 %v437, %v1577
        %v1583 = vmul.f32 %v438, %v1577
        %v1584 = vmul.f32 %v440, %v1577
        %v1585 = vmul.f32 %v441, %v1577
        %v1586 = vmul.f32 %v443, %v1577
        %v1587 = vmul.f32 %v444, %v1577
        %v1588 = vmul.f32 %v446, %v1577
        %v1589 = vmul.f32 %v447, %v1577
        %v1590 = vmul.f32 %v449, %v1577
        %v1591 = vmul.f32 %v450, %v1577
        %v1592 = vmul.f32 %v452, %v1577
        %v1593 = vmul.f32 %v453, %v1577
        %v1594 = vmul.f32 %v455, %v1577
        %v1595 = vmul.f32 %v456, %v1577
        %v1596 = vmul.f32 %v458, %v1577
        %v1597 = vmul.f32 %v459, %v1577
        %v1598 = vmul.f32 %v461, %v1577
        %v1599 = vmul.f32 %v462, %v1577
        %v1600 = vmul.f32 %v464, %v1577
        %v1601 = vmul.f32 %v465, %v1577
        %v1602 = vmul.f32 %v467, %v1577
        %v1603 = vmul.f32 %v468, %v1577
        %v1604 = vmul.f32 %v470, %v1577
        %v1605 = vmul.f32 %v471, %v1577
        %v1606 = vmul.f32 %v473, %v1577
        %v1607 = vmul.f32 %v474, %v1577
        %v1608 = vmul.f32 %v476, %v1577
        %v1609 = vmul.f32 %v477, %v1577
        %v1610 = vadd.f32 %v1545, %v1578
        %v1611 = vadd.f32 %v1546, %v1579
        %v1612 = vadd.f32 %v1547, %v1580
        %v1613 = vadd.f32 %v1548, %v1581
        %v1614 = vadd.f32 %v1549, %v1582
        %v1615 = vadd.f32 %v1550, %v1583
        %v1616 = vadd.f32 %v1551, %v1584
        %v1617 = vadd.f32 %v1552, %v1585
        %v1618 = vadd.f32 %v1553, %v1586
        %v1619 = vadd.f32 %v1554, %v1587
        %v1620 = vadd.f32 %v1555, %v1588
        %v1621 = vadd.f32 %v1556, %v1589
        %v1622 = vadd.f32 %v1557, %v1590
        %v1623 = vadd.f32 %v1558, %v1591
        %v1624 = vadd.f32 %v1559, %v1592
        %v1625 = vadd.f32 %v1560, %v1593
        %v1626 = vadd.f32 %v1561, %v1594
        %v1627 = vadd.f32 %v1562, %v1595
        %v1628 = vadd.f32 %v1563, %v1596
        %v1629 = vadd.f32 %v1564, %v1597
        %v1630 = vadd.f32 %v1565, %v1598
        %v1631 = vadd.f32 %v1566, %v1599
        %v1632 = vadd.f32 %v1567, %v1600
        %v1633 = vadd.f32 %v1568, %v1601
        %v1634 = vadd.f32 %v1569, %v1602
        %v1635 = vadd.f32 %v1570, %v1603
        %v1636 = vadd.f32 %v1571, %v1604
        %v1637 = vadd.f32 %v1572, %v1605
        %v1638 = vadd.f32 %v1573, %v1606
        %v1639 = vadd.f32 %v1574, %v1607
        %v1640 = vadd.f32 %v1575, %v1608
        %v1641 = vadd.f32 %v1576, %v1609
        %v1642 = vperm.slane %v479, 7
        %v1643 = vmul.f32 %v431, %v1642
        %v1644 = vmul.f32 %v432, %v1642
        %v1645 = vmul.f32 %v433, %v1642
        %v1646 = vmul.f32 %v434, %v1642
        %v1647 = vmul.f32 %v435, %v1642
        %v1648 = vmul.f32 %v436, %v1642
        %v1649 = vmul.f32 %v437, %v1642
        %v1650 = vmul.f32 %v438, %v1642
        %v1651 = vmul.f32 %v439, %v1642
        %v1652 = vmul.f32 %v440, %v1642
        %v1653 = vmul.f32 %v441, %v1642
        %v1654 = vmul.f32 %v442, %v1642
        %v1655 = vmul.f32 %v443, %v1642
        %v1656 = vmul.f32 %v444, %v1642
        %v1657 = vmul.f32 %v445, %v1642
        %v1658 = vmul.f32 %v446, %v1642
        %v1659 = vmul.f32 %v447, %v1642
        %v1660 = vmul.f32 %v448, %v1642
        %v1661 = vmul.f32 %v449, %v1642
        %v1662 = vmul.f32 %v450, %v1642
        %v1663 = vmul.f32 %v451, %v1642
        %v1664 = vmul.f32 %v452, %v1642
        %v1665 = vmul.f32 %v453, %v1642
        %v1666 = vmul.f32 %v454, %v1642
        %v1667 = vmul.f32 %v455, %v1642
        %v1668 = vmul.f32 %v456, %v1642
        %v1669 = vmul.f32 %v457, %v1642
        %v1670 = vmul.f32 %v458, %v1642
        %v1671 = vmul.f32 %v459, %v1642
        %v1672 = vmul.f32 %v460, %v1642
        %v1673 = vmul.f32 %v461, %v1642
        %v1674 = vmul.f32 %v462, %v1642
        %v1675 = vmul.f32 %v463, %v1642
        %v1676 = vmul.f32 %v464, %v1642
        %v1677 = vmul.f32 %v465, %v1642
        %v1678 = vmul.f32 %v466, %v1642
        %v1679 = vmul.f32 %v467, %v1642
        %v1680 = vmul.f32 %v468, %v1642
        %v1681 = vmul.f32 %v469, %v1642
        %v1682 = vmul.f32 %v470, %v1642
        %v1683 = vmul.f32 %v471, %v1642
        %v1684 = vmul.f32 %v472, %v1642
        %v1685 = vmul.f32 %v473, %v1642
        %v1686 = vmul.f32 %v474, %v1642
        %v1687 = vmul.f32 %v475, %v1642
        %v1688 = vmul.f32 %v476, %v1642
        %v1689 = vmul.f32 %v477, %v1642
        %v1690 = vmul.f32 %v478, %v1642
        %v1739 = vrot.slane %v1643, 1
        %v1740 = vrot.slane %v1644, 1
        %v1741 = vsel %vm643, %v1739, %v1740
        %v1742 = vrot.slane %v1645, 1
        %v1743 = vsel %vm643, %v1740, %v1742
        %v1744 = vrot.slane %v1646, 1
        %v1745 = vrot.slane %v1647, 1
        %v1746 = vsel %vm643, %v1744, %v1745
        %v1747 = vrot.slane %v1648, 1
        %v1748 = vsel %vm643, %v1745, %v1747
        %v1749 = vrot.slane %v1649, 1
        %v1750 = vrot.slane %v1650, 1
        %v1751 = vsel %vm643, %v1749, %v1750
        %v1752 = vrot.slane %v1651, 1
        %v1753 = vsel %vm643, %v1750, %v1752
        %v1754 = vrot.slane %v1652, 1
        %v1755 = vrot.slane %v1653, 1
        %v1756 = vsel %vm643, %v1754, %v1755
        %v1757 = vrot.slane %v1654, 1
        %v1758 = vsel %vm643, %v1755, %v1757
        %v1759 = vrot.slane %v1655, 1
        %v1760 = vrot.slane %v1656, 1
        %v1761 = vsel %vm643, %v1759, %v1760
        %v1762 = vrot.slane %v1657, 1
        %v1763 = vsel %vm643, %v1760, %v1762
        %v1764 = vrot.slane %v1658, 1
        %v1765 = vrot.slane %v1659, 1
        %v1766 = vsel %vm643, %v1764, %v1765
        %v1767 = vrot.slane %v1660, 1
        %v1768 = vsel %vm643, %v1765, %v1767
        %v1769 = vrot.slane %v1661, 1
        %v1770 = vrot.slane %v1662, 1
        %v1771 = vsel %vm643, %v1769, %v1770
        %v1772 = vrot.slane %v1663, 1
        %v1773 = vsel %vm643, %v1770, %v1772
        %v1774 = vrot.slane %v1664, 1
        %v1775 = vrot.slane %v1665, 1
        %v1776 = vsel %vm643, %v1774, %v1775
        %v1777 = vrot.slane %v1666, 1
        %v1778 = vsel %vm643, %v1775, %v1777
        %v1779 = vrot.slane %v1667, 1
        %v1780 = vrot.slane %v1668, 1
        %v1781 = vsel %vm643, %v1779, %v1780
        %v1782 = vrot.slane %v1669, 1
        %v1783 = vsel %vm643, %v1780, %v1782
        %v1784 = vrot.slane %v1670, 1
        %v1785 = vrot.slane %v1671, 1
        %v1786 = vsel %vm643, %v1784, %v1785
        %v1787 = vrot.slane %v1672, 1
        %v1788 = vsel %vm643, %v1785, %v1787
        %v1789 = vrot.slane %v1673, 1
        %v1790 = vrot.slane %v1674, 1
        %v1791 = vsel %vm643, %v1789, %v1790
        %v1792 = vrot.slane %v1675, 1
        %v1793 = vsel %vm643, %v1790, %v1792
        %v1794 = vrot.slane %v1676, 1
        %v1795 = vrot.slane %v1677, 1
        %v1796 = vsel %vm643, %v1794, %v1795
        %v1797 = vrot.slane %v1678, 1
        %v1798 = vsel %vm643, %v1795, %v1797
        %v1799 = vrot.slane %v1679, 1
        %v1800 = vrot.slane %v1680, 1
        %v1801 = vsel %vm643, %v1799, %v1800
        %v1802 = vrot.slane %v1681, 1
        %v1803 = vsel %vm643, %v1800, %v1802
        %v1804 = vrot.slane %v1682, 1
        %v1805 = vrot.slane %v1683, 1
        %v1806 = vsel %vm643, %v1804, %v1805
        %v1807 = vrot.slane %v1684, 1
        %v1808 = vsel %vm643, %v1805, %v1807
        %v1809 = vrot.slane %v1685, 1
        %v1810 = vrot.slane %v1686, 1
        %v1811 = vsel %vm643, %v1809, %v1810
        %v1812 = vrot.slane %v1687, 1
        %v1813 = vsel %vm643, %v1810, %v1812
        %v1814 = vrot.slane %v1688, 1
        %v1815 = vrot.slane %v1689, 1
        %v1816 = vsel %vm643, %v1814, %v1815
        %v1817 = vrot.slane %v1690, 1
        %v1818 = vsel %vm643, %v1815, %v1817
        %v1851 = vadd.f32 %v1610, %v1741
        %v1852 = vadd.f32 %v1611, %v1743
        %v1853 = vadd.f32 %v1612, %v1746
        %v1854 = vadd.f32 %v1613, %v1748
        %v1855 = vadd.f32 %v1614, %v1751
        %v1856 = vadd.f32 %v1615, %v1753
        %v1857 = vadd.f32 %v1616, %v1756
        %v1858 = vadd.f32 %v1617, %v1758
        %v1859 = vadd.f32 %v1618, %v1761
        %v1860 = vadd.f32 %v1619, %v1763
        %v1861 = vadd.f32 %v1620, %v1766
        %v1862 = vadd.f32 %v1621, %v1768
        %v1863 = vadd.f32 %v1622, %v1771
        %v1864 = vadd.f32 %v1623, %v1773
        %v1865 = vadd.f32 %v1624, %v1776
        %v1866 = vadd.f32 %v1625, %v1778
        %v1867 = vadd.f32 %v1626, %v1781
        %v1868 = vadd.f32 %v1627, %v1783
        %v1869 = vadd.f32 %v1628, %v1786
        %v1870 = vadd.f32 %v1629, %v1788
        %v1871 = vadd.f32 %v1630, %v1791
        %v1872 = vadd.f32 %v1631, %v1793
        %v1873 = vadd.f32 %v1632, %v1796
        %v1874 = vadd.f32 %v1633, %v1798
        %v1875 = vadd.f32 %v1634, %v1801
        %v1876 = vadd.f32 %v1635, %v1803
        %v1877 = vadd.f32 %v1636, %v1806
        %v1878 = vadd.f32 %v1637, %v1808
        %v1879 = vadd.f32 %v1638, %v1811
        %v1880 = vadd.f32 %v1639, %v1813
        %v1881 = vadd.f32 %v1640, %v1816
        %v1882 = vadd.f32 %v1641, %v1818
        %v1883 = vperm.slane %v480, 0
        %v1884 = vmul.f32 %v431, %v1883
        %v1885 = vmul.f32 %v432, %v1883
        %v1886 = vmul.f32 %v433, %v1883
        %v1887 = vmul.f32 %v434, %v1883
        %v1888 = vmul.f32 %v435, %v1883
        %v1889 = vmul.f32 %v436, %v1883
        %v1890 = vmul.f32 %v437, %v1883
        %v1891 = vmul.f32 %v438, %v1883
        %v1892 = vmul.f32 %v439, %v1883
        %v1893 = vmul.f32 %v440, %v1883
        %v1894 = vmul.f32 %v441, %v1883
        %v1895 = vmul.f32 %v442, %v1883
        %v1896 = vmul.f32 %v443, %v1883
        %v1897 = vmul.f32 %v444, %v1883
        %v1898 = vmul.f32 %v445, %v1883
        %v1899 = vmul.f32 %v446, %v1883
        %v1900 = vmul.f32 %v447, %v1883
        %v1901 = vmul.f32 %v448, %v1883
        %v1902 = vmul.f32 %v449, %v1883
        %v1903 = vmul.f32 %v450, %v1883
        %v1904 = vmul.f32 %v451, %v1883
        %v1905 = vmul.f32 %v452, %v1883
        %v1906 = vmul.f32 %v453, %v1883
        %v1907 = vmul.f32 %v454, %v1883
        %v1908 = vmul.f32 %v455, %v1883
        %v1909 = vmul.f32 %v456, %v1883
        %v1910 = vmul.f32 %v457, %v1883
        %v1911 = vmul.f32 %v458, %v1883
        %v1912 = vmul.f32 %v459, %v1883
        %v1913 = vmul.f32 %v460, %v1883
        %v1914 = vmul.f32 %v461, %v1883
        %v1915 = vmul.f32 %v462, %v1883
        %v1916 = vmul.f32 %v463, %v1883
        %v1917 = vmul.f32 %v464, %v1883
        %v1918 = vmul.f32 %v465, %v1883
        %v1919 = vmul.f32 %v466, %v1883
        %v1920 = vmul.f32 %v467, %v1883
        %v1921 = vmul.f32 %v468, %v1883
        %v1922 = vmul.f32 %v469, %v1883
        %v1923 = vmul.f32 %v470, %v1883
        %v1924 = vmul.f32 %v471, %v1883
        %v1925 = vmul.f32 %v472, %v1883
        %v1926 = vmul.f32 %v473, %v1883
        %v1927 = vmul.f32 %v474, %v1883
        %v1928 = vmul.f32 %v475, %v1883
        %v1929 = vmul.f32 %v476, %v1883
        %v1930 = vmul.f32 %v477, %v1883
        %v1931 = vmul.f32 %v478, %v1883
        %v1980 = vrot.slane %v1884, 2
        %v1981 = vrot.slane %v1885, 2
        %v1982 = vsel %vm885, %v1980, %v1981
        %v1983 = vrot.slane %v1886, 2
        %v1984 = vsel %vm885, %v1981, %v1983
        %v1985 = vrot.slane %v1887, 2
        %v1986 = vrot.slane %v1888, 2
        %v1987 = vsel %vm885, %v1985, %v1986
        %v1988 = vrot.slane %v1889, 2
        %v1989 = vsel %vm885, %v1986, %v1988
        %v1990 = vrot.slane %v1890, 2
        %v1991 = vrot.slane %v1891, 2
        %v1992 = vsel %vm885, %v1990, %v1991
        %v1993 = vrot.slane %v1892, 2
        %v1994 = vsel %vm885, %v1991, %v1993
        %v1995 = vrot.slane %v1893, 2
        %v1996 = vrot.slane %v1894, 2
        %v1997 = vsel %vm885, %v1995, %v1996
        %v1998 = vrot.slane %v1895, 2
        %v1999 = vsel %vm885, %v1996, %v1998
        %v2000 = vrot.slane %v1896, 2
        %v2001 = vrot.slane %v1897, 2
        %v2002 = vsel %vm885, %v2000, %v2001
        %v2003 = vrot.slane %v1898, 2
        %v2004 = vsel %vm885, %v2001, %v2003
        %v2005 = vrot.slane %v1899, 2
        %v2006 = vrot.slane %v1900, 2
        %v2007 = vsel %vm885, %v2005, %v2006
        %v2008 = vrot.slane %v1901, 2
        %v2009 = vsel %vm885, %v2006, %v2008
        %v2010 = vrot.slane %v1902, 2
        %v2011 = vrot.slane %v1903, 2
        %v2012 = vsel %vm885, %v2010, %v2011
        %v2013 = vrot.slane %v1904, 2
        %v2014 = vsel %vm885, %v2011, %v2013
        %v2015 = vrot.slane %v1905, 2
        %v2016 = vrot.slane %v1906, 2
        %v2017 = vsel %vm885, %v2015, %v2016
        %v2018 = vrot.slane %v1907, 2
        %v2019 = vsel %vm885, %v2016, %v2018
        %v2020 = vrot.slane %v1908, 2
        %v2021 = vrot.slane %v1909, 2
        %v2022 = vsel %vm885, %v2020, %v2021
        %v2023 = vrot.slane %v1910, 2
        %v2024 = vsel %vm885, %v2021, %v2023
        %v2025 = vrot.slane %v1911, 2
        %v2026 = vrot.slane %v1912, 2
        %v2027 = vsel %vm885, %v2025, %v2026
        %v2028 = vrot.slane %v1913, 2
        %v2029 = vsel %vm885, %v2026, %v2028
        %v2030 = vrot.slane %v1914, 2
        %v2031 = vrot.slane %v1915, 2
        %v2032 = vsel %vm885, %v2030, %v2031
        %v2033 = vrot.slane %v1916, 2
        %v2034 = vsel %vm885, %v2031, %v2033
        %v2035 = vrot.slane %v1917, 2
        %v2036 = vrot.slane %v1918, 2
        %v2037 = vsel %vm885, %v2035, %v2036
        %v2038 = vrot.slane %v1919, 2
        %v2039 = vsel %vm885, %v2036, %v2038
        %v2040 = vrot.slane %v1920, 2
        %v2041 = vrot.slane %v1921, 2
        %v2042 = vsel %vm885, %v2040, %v2041
        %v2043 = vrot.slane %v1922, 2
        %v2044 = vsel %vm885, %v2041, %v2043
        %v2045 = vrot.slane %v1923, 2
        %v2046 = vrot.slane %v1924, 2
        %v2047 = vsel %vm885, %v2045, %v2046
        %v2048 = vrot.slane %v1925, 2
        %v2049 = vsel %vm885, %v2046, %v2048
        %v2050 = vrot.slane %v1926, 2
        %v2051 = vrot.slane %v1927, 2
        %v2052 = vsel %vm885, %v2050, %v2051
        %v2053 = vrot.slane %v1928, 2
        %v2054 = vsel %vm885, %v2051, %v2053
        %v2055 = vrot.slane %v1929, 2
        %v2056 = vrot.slane %v1930, 2
        %v2057 = vsel %vm885, %v2055, %v2056
        %v2058 = vrot.slane %v1931, 2
        %v2059 = vsel %vm885, %v2056, %v2058
        %v2092 = vadd.f32 %v1851, %v1982
        %v2093 = vadd.f32 %v1852, %v1984
        %v2094 = vadd.f32 %v1853, %v1987
        %v2095 = vadd.f32 %v1854, %v1989
        %v2096 = vadd.f32 %v1855, %v1992
        %v2097 = vadd.f32 %v1856, %v1994
        %v2098 = vadd.f32 %v1857, %v1997
        %v2099 = vadd.f32 %v1858, %v1999
        %v2100 = vadd.f32 %v1859, %v2002
        %v2101 = vadd.f32 %v1860, %v2004
        %v2102 = vadd.f32 %v1861, %v2007
        %v2103 = vadd.f32 %v1862, %v2009
        %v2104 = vadd.f32 %v1863, %v2012
        %v2105 = vadd.f32 %v1864, %v2014
        %v2106 = vadd.f32 %v1865, %v2017
        %v2107 = vadd.f32 %v1866, %v2019
        %v2108 = vadd.f32 %v1867, %v2022
        %v2109 = vadd.f32 %v1868, %v2024
        %v2110 = vadd.f32 %v1869, %v2027
        %v2111 = vadd.f32 %v1870, %v2029
        %v2112 = vadd.f32 %v1871, %v2032
        %v2113 = vadd.f32 %v1872, %v2034
        %v2114 = vadd.f32 %v1873, %v2037
        %v2115 = vadd.f32 %v1874, %v2039
        %v2116 = vadd.f32 %v1875, %v2042
        %v2117 = vadd.f32 %v1876, %v2044
        %v2118 = vadd.f32 %v1877, %v2047
        %v2119 = vadd.f32 %v1878, %v2049
        %v2120 = vadd.f32 %v1879, %v2052
        %v2121 = vadd.f32 %v1880, %v2054
        %v2122 = vadd.f32 %v1881, %v2057
        %v2123 = vadd.f32 %v1882, %v2059
        %v2124 = vld [vmem:[%s3] sm:$0x1]
        %v2126 = vperm.slane %v2124, 0
        %v2128 = vadd.f32 %v2092, %v2126
        %v2129 = vadd.f32 %v2093, %v2126
        %v2130 = vadd.f32 %v2094, %v2126
        %v2131 = vadd.f32 %v2095, %v2126
        %v2132 = vadd.f32 %v2096, %v2126
        %v2133 = vadd.f32 %v2097, %v2126
        %v2134 = vadd.f32 %v2098, %v2126
        %v2135 = vadd.f32 %v2099, %v2126
        %v2136 = vadd.f32 %v2100, %v2126
        %v2137 = vadd.f32 %v2101, %v2126
        %v2138 = vadd.f32 %v2102, %v2126
        %v2139 = vadd.f32 %v2103, %v2126
        %v2140 = vadd.f32 %v2104, %v2126
        %v2141 = vadd.f32 %v2105, %v2126
        %v2142 = vadd.f32 %v2106, %v2126
        %v2143 = vadd.f32 %v2107, %v2126
        %v2144 = vadd.f32 %v2108, %v2126
        %v2145 = vadd.f32 %v2109, %v2126
        %v2146 = vadd.f32 %v2110, %v2126
        %v2147 = vadd.f32 %v2111, %v2126
        %v2148 = vadd.f32 %v2112, %v2126
        %v2149 = vadd.f32 %v2113, %v2126
        %v2150 = vadd.f32 %v2114, %v2126
        %v2151 = vadd.f32 %v2115, %v2126
        %v2152 = vadd.f32 %v2116, %v2126
        %v2153 = vadd.f32 %v2117, %v2126
        %v2154 = vadd.f32 %v2118, %v2126
        %v2155 = vadd.f32 %v2119, %v2126
        %v2156 = vadd.f32 %v2120, %v2126
        %v2157 = vadd.f32 %v2121, %v2126
        %v2158 = vadd.f32 %v2122, %v2126
        %v2159 = vadd.f32 %v2123, %v2126
        %v2160 = vmax.f32 %v2128, 0.0
        %v2161 = vmax.f32 %v2129, 0.0
        %v2162 = vmax.f32 %v2130, 0.0
        %v2163 = vmax.f32 %v2131, 0.0
        %v2164 = vmax.f32 %v2132, 0.0
        %v2165 = vmax.f32 %v2133, 0.0
        %v2166 = vmax.f32 %v2134, 0.0
        %v2167 = vmax.f32 %v2135, 0.0
        %v2168 = vmax.f32 %v2136, 0.0
        %v2169 = vmax.f32 %v2137, 0.0
        %v2170 = vmax.f32 %v2138, 0.0
        %v2171 = vmax.f32 %v2139, 0.0
        %v2172 = vmax.f32 %v2140, 0.0
        %v2173 = vmax.f32 %v2141, 0.0
        %v2174 = vmax.f32 %v2142, 0.0
        %v2175 = vmax.f32 %v2143, 0.0
        %v2176 = vmax.f32 %v2144, 0.0
        %v2177 = vmax.f32 %v2145, 0.0
        %v2178 = vmax.f32 %v2146, 0.0
        %v2179 = vmax.f32 %v2147, 0.0
        %v2180 = vmax.f32 %v2148, 0.0
        %v2181 = vmax.f32 %v2149, 0.0
        %v2182 = vmax.f32 %v2150, 0.0
        %v2183 = vmax.f32 %v2151, 0.0
        %v2184 = vmax.f32 %v2152, 0.0
        %v2185 = vmax.f32 %v2153, 0.0
        %v2186 = vmax.f32 %v2154, 0.0
        %v2187 = vmax.f32 %v2155, 0.0
        %v2188 = vmax.f32 %v2156, 0.0
        %v2189 = vmax.f32 %v2157, 0.0
        %v2190 = vmax.f32 %v2158, 0.0
        %v2191 = vmax.f32 %v2159, 0.0
        %v2192 = vpack.c.bf16 %v2160, %v2160
        %v2193 = vpack.c.bf16 %v2161, %v2161
        %v2194 = vpack.c.bf16 %v2162, %v2162
        %v2195 = vpack.c.bf16 %v2163, %v2163
        %v2196 = vpack.c.bf16 %v2164, %v2164
        %v2197 = vpack.c.bf16 %v2165, %v2165
        %v2198 = vpack.c.bf16 %v2166, %v2166
        %v2199 = vpack.c.bf16 %v2167, %v2167
        %v2200 = vpack.c.bf16 %v2168, %v2168
        %v2201 = vpack.c.bf16 %v2169, %v2169
        %v2202 = vpack.c.bf16 %v2170, %v2170
        %v2203 = vpack.c.bf16 %v2171, %v2171
        %v2204 = vpack.c.bf16 %v2172, %v2172
        %v2205 = vpack.c.bf16 %v2173, %v2173
        %v2206 = vpack.c.bf16 %v2174, %v2174
        %v2207 = vpack.c.bf16 %v2175, %v2175
        %v2208 = vpack.c.bf16 %v2176, %v2176
        %v2209 = vpack.c.bf16 %v2177, %v2177
        %v2210 = vpack.c.bf16 %v2178, %v2178
        %v2211 = vpack.c.bf16 %v2179, %v2179
        %v2212 = vpack.c.bf16 %v2180, %v2180
        %v2213 = vpack.c.bf16 %v2181, %v2181
        %v2214 = vpack.c.bf16 %v2182, %v2182
        %v2215 = vpack.c.bf16 %v2183, %v2183
        %v2216 = vpack.c.bf16 %v2184, %v2184
        %v2217 = vpack.c.bf16 %v2185, %v2185
        %v2218 = vpack.c.bf16 %v2186, %v2186
        %v2219 = vpack.c.bf16 %v2187, %v2187
        %v2220 = vpack.c.bf16 %v2188, %v2188
        %v2221 = vpack.c.bf16 %v2189, %v2189
        %v2222 = vpack.c.bf16 %v2190, %v2190
        %v2223 = vpack.c.bf16 %v2191, %v2191
        %vm2224 = vcmask 27648
        %2225 = vst.msk [vmem:[#allocation2] sm:$0xf] %vm2224, %v2192
        %2226 = vst.msk [vmem:[#allocation2 + $0x4] sm:$0xf] %vm2224, %v2193
        %2227 = vst.msk [vmem:[#allocation2 + $0x8] sm:$0xf] %vm2224, %v2194
        %2228 = vst.msk [vmem:[#allocation2 + $0xc] sm:$0xf] %vm2224, %v2195
        %2229 = vst.msk [vmem:[#allocation2 + $0x10] sm:$0xf] %vm2224, %v2196
        %2230 = vst.msk [vmem:[#allocation2 + $0x14] sm:$0xf] %vm2224, %v2197
        %2231 = vst.msk [vmem:[#allocation2 + $0x18] sm:$0xf] %vm2224, %v2198
        %2232 = vst.msk [vmem:[#allocation2 + $0x1c] sm:$0xf] %vm2224, %v2199
        %2233 = vst.msk [vmem:[#allocation2 + $0x20] sm:$0xf] %vm2224, %v2200
        %2234 = vst.msk [vmem:[#allocation2 + $0x24] sm:$0xf] %vm2224, %v2201
        %2235 = vst.msk [vmem:[#allocation2 + $0x28] sm:$0xf] %vm2224, %v2202
        %2236 = vst.msk [vmem:[#allocation2 + $0x2c] sm:$0xf] %vm2224, %v2203
        %2237 = vst.msk [vmem:[#allocation2 + $0x30] sm:$0xf] %vm2224, %v2204
        %2238 = vst.msk [vmem:[#allocation2 + $0x34] sm:$0xf] %vm2224, %v2205
        %2239 = vst.msk [vmem:[#allocation2 + $0x38] sm:$0xf] %vm2224, %v2206
        %2240 = vst.msk [vmem:[#allocation2 + $0x3c] sm:$0xf] %vm2224, %v2207
        %2241 = vst.msk [vmem:[#allocation2 + $0x40] sm:$0xf] %vm2224, %v2208
        %2242 = vst.msk [vmem:[#allocation2 + $0x44] sm:$0xf] %vm2224, %v2209
        %2243 = vst.msk [vmem:[#allocation2 + $0x48] sm:$0xf] %vm2224, %v2210
        %2244 = vst.msk [vmem:[#allocation2 + $0x4c] sm:$0xf] %vm2224, %v2211
        %2245 = vst.msk [vmem:[#allocation2 + $0x50] sm:$0xf] %vm2224, %v2212
        %2246 = vst.msk [vmem:[#allocation2 + $0x54] sm:$0xf] %vm2224, %v2213
        %2247 = vst.msk [vmem:[#allocation2 + $0x58] sm:$0xf] %vm2224, %v2214
        %2248 = vst.msk [vmem:[#allocation2 + $0x5c] sm:$0xf] %vm2224, %v2215
        %2249 = vst.msk [vmem:[#allocation2 + $0x60] sm:$0xf] %vm2224, %v2216
        %2250 = vst.msk [vmem:[#allocation2 + $0x64] sm:$0xf] %vm2224, %v2217
        %2251 = vst.msk [vmem:[#allocation2 + $0x68] sm:$0xf] %vm2224, %v2218
        %2252 = vst.msk [vmem:[#allocation2 + $0x6c] sm:$0xf] %vm2224, %v2219
        %2253 = vst.msk [vmem:[#allocation2 + $0x70] sm:$0xf] %vm2224, %v2220
        %2254 = vst.msk [vmem:[#allocation2 + $0x74] sm:$0xf] %vm2224, %v2221
        %2255 = vst.msk [vmem:[#allocation2 + $0x78] sm:$0xf] %vm2224, %v2222
        %2256 = vst.msk [vmem:[#allocation2 + $0x7c] sm:$0xf] %vm2224, %v2223
      $region48: #{dwconv_forward.1} parent=43 // pred_fallthru
        _
      %v2257 = vld [vmem:[#allocation2] sm:$0xf]
      %v2258 = vld [vmem:[#allocation2 + $0x4] sm:$0xf]
      %v2259 = vld [vmem:[#allocation2 + $0x8] sm:$0xf]
      %v2260 = vld [vmem:[#allocation2 + $0xc] sm:$0xf]
      %v2261 = vld [vmem:[#allocation2 + $0x10] sm:$0xf]
      %v2262 = vld [vmem:[#allocation2 + $0x14] sm:$0xf]
      %v2263 = vld [vmem:[#allocation2 + $0x18] sm:$0xf]
      %v2264 = vld [vmem:[#allocation2 + $0x1c] sm:$0xf]
      %v2265 = vld [vmem:[#allocation2 + $0x20] sm:$0xf]
      %v2266 = vld [vmem:[#allocation2 + $0x24] sm:$0xf]
      %v2267 = vld [vmem:[#allocation2 + $0x28] sm:$0xf]
      %v2268 = vld [vmem:[#allocation2 + $0x2c] sm:$0xf]
      %v2269 = vld [vmem:[#allocation2 + $0x30] sm:$0xf]
      %v2270 = vld [vmem:[#allocation2 + $0x34] sm:$0xf]
      %v2271 = vld [vmem:[#allocation2 + $0x38] sm:$0xf]
      %v2272 = vld [vmem:[#allocation2 + $0x3c] sm:$0xf]
      %v2273 = vld [vmem:[#allocation2 + $0x40] sm:$0xf]
      %v2274 = vld [vmem:[#allocation2 + $0x44] sm:$0xf]
      %v2275 = vld [vmem:[#allocation2 + $0x48] sm:$0xf]
      %v2276 = vld [vmem:[#allocation2 + $0x4c] sm:$0xf]
      %v2277 = vld [vmem:[#allocation2 + $0x50] sm:$0xf]
      %v2278 = vld [vmem:[#allocation2 + $0x54] sm:$0xf]
      %v2279 = vld [vmem:[#allocation2 + $0x58] sm:$0xf]
      %v2280 = vld [vmem:[#allocation2 + $0x5c] sm:$0xf]
      %v2281 = vld [vmem:[#allocation2 + $0x60] sm:$0xf]
      %v2282 = vld [vmem:[#allocation2 + $0x64] sm:$0xf]
      %v2283 = vld [vmem:[#allocation2 + $0x68] sm:$0xf]
      %v2284 = vld [vmem:[#allocation2 + $0x6c] sm:$0xf]
      %v2285 = vld [vmem:[#allocation2 + $0x70] sm:$0xf]
      %v2286 = vld [vmem:[#allocation2 + $0x74] sm:$0xf]
      %v2287 = vld [vmem:[#allocation2 + $0x78] sm:$0xf]
      %v2288 = vld [vmem:[#allocation2 + $0x7c] sm:$0xf]
      %v2289 = vld [vmem:[%s402] sm:$0x3]
      %v2290 = vld [vmem:[%s405] sm:$0x1]
      %v2292 = vperm.slane %v2290, 0
      %v2326 = vunpack.c.l.b16 %v2257
      %v2327 = vunpack.c.l.b16 %v2258
      %v2328 = vunpack.c.l.b16 %v2259
      %v2329 = vunpack.c.l.b16 %v2260
      %v2330 = vunpack.c.l.b16 %v2261
      %v2331 = vunpack.c.l.b16 %v2262
      %v2332 = vunpack.c.l.b16 %v2263
      %v2333 = vunpack.c.l.b16 %v2264
      %v2334 = vunpack.c.l.b16 %v2265
      %v2335 = vunpack.c.l.b16 %v2266
      %v2336 = vunpack.c.l.b16 %v2267
      %v2337 = vunpack.c.l.b16 %v2268
      %v2338 = vunpack.c.l.b16 %v2269
      %v2339 = vunpack.c.l.b16 %v2270
      %v2340 = vunpack.c.l.b16 %v2271
      %v2341 = vunpack.c.l.b16 %v2272
      %v2342 = vunpack.c.l.b16 %v2273
      %v2343 = vunpack.c.l.b16 %v2274
      %v2344 = vunpack.c.l.b16 %v2275
      %v2345 = vunpack.c.l.b16 %v2276
      %v2346 = vunpack.c.l.b16 %v2277
      %v2347 = vunpack.c.l.b16 %v2278
      %v2348 = vunpack.c.l.b16 %v2279
      %v2349 = vunpack.c.l.b16 %v2280
      %v2350 = vunpack.c.l.b16 %v2281
      %v2351 = vunpack.c.l.b16 %v2282
      %v2352 = vunpack.c.l.b16 %v2283
      %v2353 = vunpack.c.l.b16 %v2284
      %v2354 = vunpack.c.l.b16 %v2285
      %v2355 = vunpack.c.l.b16 %v2286
      %v2356 = vunpack.c.l.b16 %v2287
      %v2357 = vunpack.c.l.b16 %v2288
      %v2358 = vpack.c.b16 %v2327, %v2326
      %v2359 = vpack.c.b16 %v2329, %v2328
      %v2360 = vpack.c.b16 %v2331, %v2330
      %v2361 = vpack.c.b16 %v2333, %v2332
      %v2362 = vpack.c.b16 %v2335, %v2334
      %v2363 = vpack.c.b16 %v2337, %v2336
      %v2364 = vpack.c.b16 %v2339, %v2338
      %v2365 = vpack.c.b16 %v2341, %v2340
      %v2366 = vpack.c.b16 %v2343, %v2342
      %v2367 = vpack.c.b16 %v2345, %v2344
      %v2368 = vpack.c.b16 %v2347, %v2346
      %v2369 = vpack.c.b16 %v2349, %v2348
      %v2370 = vpack.c.b16 %v2351, %v2350
      %v2371 = vpack.c.b16 %v2353, %v2352
      %v2372 = vpack.c.b16 %v2355, %v2354
      %v2373 = vpack.c.b16 %v2357, %v2356
      %vm2374 = vcmask 31744
      %v2376 = vsel %vm2374, %v2358, 0
      %v2379 = vsel %vm2374, %v2359, 0
      %v2382 = vsel %vm2374, %v2360, 0
      %v2385 = vsel %vm2374, %v2361, 0
      %v2388 = vsel %vm2374, %v2362, 0
      %v2391 = vsel %vm2374, %v2363, 0
      %v2394 = vsel %vm2374, %v2364, 0
      %v2397 = vsel %vm2374, %v2365, 0
      %v2400 = vsel %vm2374, %v2366, 0
      %v2403 = vsel %vm2374, %v2367, 0
      %v2406 = vsel %vm2374, %v2368, 0
      %v2409 = vsel %vm2374, %v2369, 0
      %v2412 = vsel %vm2374, %v2370, 0
      %v2415 = vsel %vm2374, %v2371, 0
      %v2418 = vsel %vm2374, %v2372, 0
      %v2421 = vsel %vm2374, %v2373, 0
      %vm2423 = vcmask 1041408
      %v2425 = vsel %vm2423, %v2289, 0
      %2427 = vmatpush.bf16.msra.mxu0 0
      %2428 = vmatpush.bf16.msra.mxu0 0
      %2429 = vmatpush.bf16.msra.mxu0 0
      %2430 = vmatpush.bf16.msra.mxu0 0
      %2431 = vmatpush.bf16.msra.mxu0 0
      %2432 = vmatpush.bf16.msra.mxu0 0
      %2433 = vmatpush.bf16.msra.mxu0 0
      %2434 = vmatpush.bf16.msra.mxu0 %v2425
      %2435 = vmatmul.bf16.gmra.mxu0 %v2376
      %v2436 = vpop.f32.mrf.mxu0
      %v2437 = vadd.f32 %v2292, %v2436
      %v2438 = vpop.f32.mrf.mxu0
      %v2439 = vadd.f32 %v2292, %v2438
      %2440 = vmatmul.bf16.gmra.mxu0 %v2379
      %v2441 = vpop.f32.mrf.mxu0
      %v2442 = vadd.f32 %v2292, %v2441
      %v2443 = vpop.f32.mrf.mxu0
      %v2444 = vadd.f32 %v2292, %v2443
      %2445 = vmatmul.bf16.gmra.mxu0 %v2382
      %v2446 = vpop.f32.mrf.mxu0
      %v2447 = vadd.f32 %v2292, %v2446
      %v2448 = vpop.f32.mrf.mxu0
      %v2449 = vadd.f32 %v2292, %v2448
      %2450 = vmatmul.bf16.gmra.mxu0 %v2385
      %v2451 = vpop.f32.mrf.mxu0
      %v2452 = vadd.f32 %v2292, %v2451
      %v2453 = vpop.f32.mrf.mxu0
      %v2454 = vadd.f32 %v2292, %v2453
      %2455 = vmatmul.bf16.gmra.mxu0 %v2388
      %v2456 = vpop.f32.mrf.mxu0
      %v2457 = vadd.f32 %v2292, %v2456
      %v2458 = vpop.f32.mrf.mxu0
      %v2459 = vadd.f32 %v2292, %v2458
      %2460 = vmatmul.bf16.gmra.mxu0 %v2391
      %v2461 = vpop.f32.mrf.mxu0
      %v2462 = vadd.f32 %v2292, %v2461
      %v2463 = vpop.f32.mrf.mxu0
      %v2464 = vadd.f32 %v2292, %v2463
      %2465 = vmatmul.bf16.gmra.mxu0 %v2394
      %v2466 = vpop.f32.mrf.mxu0
      %v2467 = vadd.f32 %v2292, %v2466
      %v2468 = vpop.f32.mrf.mxu0
      %v2469 = vadd.f32 %v2292, %v2468
      %2470 = vmatmul.bf16.gmra.mxu0 %v2397
      %v2471 = vpop.f32.mrf.mxu0
      %v2472 = vadd.f32 %v2292, %v2471
      %v2473 = vpop.f32.mrf.mxu0
      %v2474 = vadd.f32 %v2292, %v2473
      %2475 = vmatmul.bf16.gmra.mxu0 %v2400
      %v2476 = vpop.f32.mrf.mxu0
      %v2477 = vadd.f32 %v2292, %v2476
      %v2478 = vpop.f32.mrf.mxu0
      %v2479 = vadd.f32 %v2292, %v2478
      %2480 = vmatmul.bf16.gmra.mxu0 %v2403
      %v2481 = vpop.f32.mrf.mxu0
      %v2482 = vadd.f32 %v2292, %v2481
      %v2483 = vpop.f32.mrf.mxu0
      %v2484 = vadd.f32 %v2292, %v2483
      %2485 = vmatmul.bf16.gmra.mxu0 %v2406
      %v2486 = vpop.f32.mrf.mxu0
      %v2487 = vadd.f32 %v2292, %v2486
      %v2488 = vpop.f32.mrf.mxu0
      %v2489 = vadd.f32 %v2292, %v2488
      %2490 = vmatmul.bf16.gmra.mxu0 %v2409
      %v2491 = vpop.f32.mrf.mxu0
      %v2492 = vadd.f32 %v2292, %v2491
      %v2493 = vpop.f32.mrf.mxu0
      %v2494 = vadd.f32 %v2292, %v2493
      %2495 = vmatmul.bf16.gmra.mxu0 %v2412
      %v2496 = vpop.f32.mrf.mxu0
      %v2497 = vadd.f32 %v2292, %v2496
      %v2498 = vpop.f32.mrf.mxu0
      %v2499 = vadd.f32 %v2292, %v2498
      %2500 = vmatmul.bf16.gmra.mxu0 %v2415
      %v2501 = vpop.f32.mrf.mxu0
      %v2502 = vadd.f32 %v2292, %v2501
      %v2503 = vpop.f32.mrf.mxu0
      %v2504 = vadd.f32 %v2292, %v2503
      %2505 = vmatmul.bf16.gmra.mxu0 %v2418
      %v2506 = vpop.f32.mrf.mxu0
      %v2507 = vadd.f32 %v2292, %v2506
      %v2508 = vpop.f32.mrf.mxu0
      %v2509 = vadd.f32 %v2292, %v2508
      %2510 = vmatmul.bf16.gmra.mxu0 %v2421
      %v2511 = vpop.f32.mrf.mxu0
      %v2512 = vadd.f32 %v2292, %v2511
      %v2513 = vpop.f32.mrf.mxu0
      %v2514 = vadd.f32 %v2292, %v2513
      %2515 = vdwg.mxu0
      %v2516 = vmax.f32 %v2437, 0.0
      %v2517 = vmax.f32 %v2439, 0.0
      %v2518 = vmax.f32 %v2442, 0.0
      %v2519 = vmax.f32 %v2444, 0.0
      %v2520 = vmax.f32 %v2447, 0.0
      %v2521 = vmax.f32 %v2449, 0.0
      %v2522 = vmax.f32 %v2452, 0.0
      %v2523 = vmax.f32 %v2454, 0.0
      %v2524 = vmax.f32 %v2457, 0.0
      %v2525 = vmax.f32 %v2459, 0.0
      %v2526 = vmax.f32 %v2462, 0.0
      %v2527 = vmax.f32 %v2464, 0.0
      %v2528 = vmax.f32 %v2467, 0.0
      %v2529 = vmax.f32 %v2469, 0.0
      %v2530 = vmax.f32 %v2472, 0.0
      %v2531 = vmax.f32 %v2474, 0.0
      %v2532 = vmax.f32 %v2477, 0.0
      %v2533 = vmax.f32 %v2479, 0.0
      %v2534 = vmax.f32 %v2482, 0.0
      %v2535 = vmax.f32 %v2484, 0.0
      %v2536 = vmax.f32 %v2487, 0.0
      %v2537 = vmax.f32 %v2489, 0.0
      %v2538 = vmax.f32 %v2492, 0.0
      %v2539 = vmax.f32 %v2494, 0.0
      %v2540 = vmax.f32 %v2497, 0.0
      %v2541 = vmax.f32 %v2499, 0.0
      %v2542 = vmax.f32 %v2502, 0.0
      %v2543 = vmax.f32 %v2504, 0.0
      %v2544 = vmax.f32 %v2507, 0.0
      %v2545 = vmax.f32 %v2509, 0.0
      %v2546 = vmax.f32 %v2512, 0.0
      %v2547 = vmax.f32 %v2514, 0.0
      %2548 = vst [vmem:[%s418] sm:$0xff] %v2516
      %2549 = vst [vmem:[%s418 + $0x8] sm:$0xff] %v2517
      %2550 = vst [vmem:[%s418 + $0x10] sm:$0xff] %v2518
      %2551 = vst [vmem:[%s418 + $0x18] sm:$0xff] %v2519
      %2552 = vst [vmem:[%s418 + $0x20] sm:$0xff] %v2520
      %2553 = vst [vmem:[%s418 + $0x28] sm:$0xff] %v2521
      %2554 = vst [vmem:[%s418 + $0x30] sm:$0xff] %v2522
      %2555 = vst [vmem:[%s418 + $0x38] sm:$0xff] %v2523
      %2556 = vst [vmem:[%s418 + $0x40] sm:$0xff] %v2524
      %2557 = vst [vmem:[%s418 + $0x48] sm:$0xff] %v2525
      %2558 = vst [vmem:[%s418 + $0x50] sm:$0xff] %v2526
      %2559 = vst [vmem:[%s418 + $0x58] sm:$0xff] %v2527
      %2560 = vst [vmem:[%s418 + $0x60] sm:$0xff] %v2528
      %2561 = vst [vmem:[%s418 + $0x68] sm:$0xff] %v2529
      %2562 = vst [vmem:[%s418 + $0x70] sm:$0xff] %v2530
      %2563 = vst [vmem:[%s418 + $0x78] sm:$0xff] %v2531
      %2564 = vst [vmem:[%s418 + $0x80] sm:$0xff] %v2532
      %2565 = vst [vmem:[%s418 + $0x88] sm:$0xff] %v2533
      %2566 = vst [vmem:[%s418 + $0x90] sm:$0xff] %v2534
      %2567 = vst [vmem:[%s418 + $0x98] sm:$0xff] %v2535
      %2568 = vst [vmem:[%s418 + $0xa0] sm:$0xff] %v2536
      %2569 = vst [vmem:[%s418 + $0xa8] sm:$0xff] %v2537
      %2570 = vst [vmem:[%s418 + $0xb0] sm:$0xff] %v2538
      %2571 = vst [vmem:[%s418 + $0xb8] sm:$0xff] %v2539
      %2572 = vst [vmem:[%s418 + $0xc0] sm:$0xff] %v2540
      %2573 = vst [vmem:[%s418 + $0xc8] sm:$0xff] %v2541
      %2574 = vst [vmem:[%s418 + $0xd0] sm:$0xff] %v2542
      %2575 = vst [vmem:[%s418 + $0xd8] sm:$0xff] %v2543
      %2576 = vst [vmem:[%s418 + $0xe0] sm:$0xff] %v2544
      %2577 = vst [vmem:[%s418 + $0xe8] sm:$0xff] %v2545
      %2578 = vst [vmem:[%s418 + $0xf0] sm:$0xff] %v2546
      %2579 = vst [vmem:[%s418 + $0xf8] sm:$0xff] %v2547
      %s2580 = smul.u32 16, %s23
      %p2581 = scmp.lt.s32.totalorder %s22, 1
      %s2582 = scalar_select %p2581, %s22, 1
      %p2583 = scmp.lt.s32.totalorder %s2580, 15
      %s2584 = scalar_select %p2583, %s2580, 15
      %p2585 = scmp.lt.s32.totalorder %s24, 0
      %s2586 = scalar_select %p2585, %s24, 0
      %s2587 = smul.addr %s2584, 2
      %s2588 = sadd.s32 %s2586, %s2587
      %s2589 = smul.addr %s2582, 32
      %s2590 = sadd.s32 %s2588, %s2589
      %s2591 = smul.addr %s2590, 8
      %s2592 = scalar_lea.vmem %s6, %s2591
      // Predicated region
      $region49: #{dwconv_forward.1} parent=43 // pred_check
        %p2593 = pneg %p212
      $region50: #{dwconv_forward.1} parent=43 // pred_check_branch
        %2595 = sbr.rel (%p2593) target = $region52
      $region51: #{dwconv_forward.1} parent=43 // pred_region
        %s2596 = smul.u32 16, %s23
      $region52: #{dwconv_forward.1} parent=43 // pred_fallthru
        _
    $region44: #{dwconv_forward.1} parent=5 // pred_fallthru
      _
    %p2597 = scmp.le.s32.totalorder 2, %s12
    // Predicated region
    $region53: #{dwconv_forward.1} parent=5 // pred_check
      %p2598 = pneg %p2597
    $region54: #{dwconv_forward.1} parent=5 // pred_check_branch
      %2600 = sbr.rel (%p2598) target = $region56
    $region55: #{dwconv_forward.1} parent=5 // pred_region
      %s2601 = ssub.s32 %s12, 2
      // Predicated region
      $region57: #{dwconv_forward.1} parent=55 // pred_check
        %p2602 = pneg %p218
      $region58: #{dwconv_forward.1} parent=55 // pred_check_branch
        %2604 = sbr.rel (%p2602) target = $region60
      $region59: #{dwconv_forward.1} parent=55 // pred_region
        %s2605 = smul.u32 16, %s26
        %p2606 = scmp.lt.s32.totalorder %s25, 1
        %s2607 = scalar_select %p2606, %s25, 1
        %p2608 = scmp.lt.s32.totalorder %s2605, 15
        %s2609 = scalar_select %p2608, %s2605, 15
        %p2610 = scmp.lt.s32.totalorder %s27, 0
        %s2611 = scalar_select %p2610, %s27, 0
        %s2612 = smul.addr %s2609, 2
        %s2613 = sadd.s32 %s2611, %s2612
        %s2614 = smul.addr %s2607, 32
        %s2615 = sadd.s32 %s2613, %s2614
        %s2616 = smul.addr %s2615, 8
        %s2617 = scalar_lea.vmem %s6, %s2616
      $region60: #{dwconv_forward.1} parent=55 // pred_fallthru
        _
    $region56: #{dwconv_forward.1} parent=5 // pred_fallthru
      _
  $region6: #{dwconv_forward.1} parent=0 // loop_footer
    %s16 = sadd.s32 1, %s12
  $region7: #{dwconv_forward.1} parent=0 // loop_footer_branch
    %11 = sbr.rel target = $region3
  $region8: #{dwconv_forward.1} parent=0 // loop_exit
    _

</llo_original>
